<compile_context>
chip_gen: v7x
topology: tpu7x:2x2x1
jax: 0.10.0
libtpu: 0.0.40
codegen_flags: <defaults>
</compile_context>

<pallas_src>
import functools

import jax
import jax.numpy as jnp
from jax.experimental import pallas as pl
from jax.experimental.pallas import tpu as pltpu

MM_EMBEDDINGS_DIM = 50
MM_HIDDEN_SIZE = 128
MM_MAX_DICT_SIZE = 100

_VMEM = pl.BlockSpec(memory_space=pltpu.MemorySpace.VMEM)


# ----------------------------------------------------------------------------
# Pallas kernels
# ----------------------------------------------------------------------------
def _matmul_bias_kernel(x_ref, w_ref, b_ref, o_ref, *, relu):
    y = jnp.dot(x_ref[...], w_ref[...], preferred_element_type=jnp.float32)
    y = y + b_ref[...]
    if relu:
        y = jnp.maximum(y, 0.0)
    o_ref[...] = y.astype(o_ref.dtype)


def matmul_bias(x, w, b, *, relu=False, out_dtype=jnp.float32, tm=512):
    """y = relu?(x @ w + b).  x/w are bf16 MXU operands, accumulation in f32.

    Gridded over M so the im2col patch matrix never has to fit in VMEM whole;
    the M axis is "parallel" (shardable across the two v7x TensorCores).
    """
    M, K = x.shape
    N = w.shape[1]
    tm = M if M <= tm else tm              # either full-M block or a multiple of 8
    grid = (pl.cdiv(M, tm),)
    return pl.pallas_call(
        functools.partial(_matmul_bias_kernel, relu=relu),
        out_shape=jax.ShapeDtypeStruct((M, N), out_dtype),
        grid_spec=pltpu.PrefetchScalarGridSpec(
            num_scalar_prefetch=0,
            grid=grid,
            in_specs=[pl.BlockSpec((tm, K), lambda i: (i, 0)),
                      pl.BlockSpec((K, N), lambda i: (0, 0)),
                      pl.BlockSpec((1, N), lambda i: (0, 0))],
            out_specs=pl.BlockSpec((tm, N), lambda i: (i, 0)),
        ),
        compiler_params=pltpu.CompilerParams(
            dimension_semantics=("parallel",),
            vmem_limit_bytes=32 * 1024 * 1024,
        ),
    )(x, w, b.reshape(1, N).astype(jnp.float32))


def _lstm_kernel(gx_ref, lens_ref, whh_ref, h_ref, c_ref):
    """Recurrence only: input projection (x @ W_ih + b_ih + b_hh) is precomputed."""
    T, B, _G = gx_ref.shape
    H = h_ref.shape[-1]
    lens = lens_ref[...]                                    # (B, 1) int32

    def step(t, carry):
        h, c = carry
        gates = gx_ref[t] + jnp.dot(h.astype(whh_ref.dtype), whh_ref[...],
                                    preferred_element_type=jnp.float32)
        # PyTorch LSTM gate order: i, f, g, o
        i = jax.nn.sigmoid(gates[:, 0 * H:1 * H])
        f = jax.nn.sigmoid(gates[:, 1 * H:2 * H])
        g = jnp.tanh(gates[:, 2 * H:3 * H])
        o = jax.nn.sigmoid(gates[:, 3 * H:4 * H])
        c_new = f * c + i * g
        h_new = o * jnp.tanh(c_new)
        keep = t < lens                                     # PackedSequence emulation
        return jnp.where(keep, h_new, h), jnp.where(keep, c_new, c)

    h0 = jnp.zeros((B, H), jnp.float32)
    c0 = jnp.zeros((B, H), jnp.float32)
    h, c = jax.lax.fori_loop(0, T, step, (h0, c0), unroll=True)
    h_ref[...] = h
    c_ref[...] = c


def lstm_final_state(gx_tbg, lengths, w_hh_t):
    T, B, G = gx_tbg.shape
    H = G // 4
    return pl.pallas_call(
        _lstm_kernel,
        out_shape=(jax.ShapeDtypeStruct((B, H), jnp.float32),
                   jax.ShapeDtypeStruct((B, H), jnp.float32)),
        in_specs=[_VMEM, _VMEM, _VMEM],
        out_specs=(_VMEM, _VMEM),
    )(gx_tbg, lengths.reshape(B, 1).astype(jnp.int32), w_hh_t)


# ----------------------------------------------------------------------------
# JAX glue: patch extraction, parameter prep, full forward
# ----------------------------------------------------------------------------
def conv_out_dims(h, w):
    h1, w1 = (h - 5) // 5 + 1, (w - 5) // 5 + 1
    h2, w2 = (h1 - 3) // 2 + 1, (w1 - 3) // 2 + 1
    return (h1, w1), (h2, w2)


def patches_conv1(x_nchw):
    """5x5 / stride 5 (non-overlapping): patch extraction is a pure reshape.

    Returns (B*Ho*Wo, C*25) with feature order (C, kh, kw), matching the
    PyTorch weight layout (out, in, kh, kw).reshape(out, -1).
    """
    B, C, H, W = x_nchw.shape
    Ho, Wo = (H - 5) // 5 + 1, (W - 5) // 5 + 1
    x = x_nchw[:, :, :Ho * 5, :Wo * 5]
    x = x.reshape(B, C, Ho, 5, Wo, 5).transpose(0, 2, 4, 1, 3, 5)
    return x.reshape(B * Ho * Wo, C * 25), Ho, Wo


def im2col_nhwc(x, kh, kw, stride):
    """(B,H,W,C) -> (B*Ho*Wo, kh*kw*C) with feature order (kh, kw, C)."""
    B, H, W, C = x.shape
    Ho = (H - kh) // stride + 1
    Wo = (W - kw) // stride + 1
    cols = [x[:, i:i + stride * Ho:stride, j:j + stride * Wo:stride, :]
            for i in range(kh) for j in range(kw)]
    col = jnp.stack(cols, axis=3)                           # (B, Ho, Wo, kh*kw, C)
    return col.reshape(B * Ho * Wo, kh * kw * C), Ho, Wo


def init_params(key, input_shape, n_actions):
    """PyTorch-layout parameters (as nn.Module would hold them)."""
    C, H, W = input_shape
    (_, _), (h2, w2) = conv_out_dims(H, W)
    conv_out_size = 64 * h2 * w2
    feat_dim = conv_out_size + 2 * MM_HIDDEN_SIZE
    Hh = MM_HIDDEN_SIZE
    ks = jax.random.split(key, 14)

    def u(k, shape, fan_in):
        bound = 1.0 / float(fan_in) ** 0.5
        return jax.random.uniform(k, shape, jnp.float32, -bound, bound)

    return {
        "conv1_w": u(ks[0], (64, C, 5, 5), C * 25),
        "conv1_b": u(ks[1], (64,), C * 25),
        "conv2_w": u(ks[2], (64, 64, 3, 3), 64 * 9),
        "conv2_b": u(ks[3], (64,), 64 * 9),
        "emb": jax.random.normal(ks[4], (MM_MAX_DICT_SIZE, MM_EMBEDDINGS_DIM),
                                 jnp.float32),
        "w_ih": u(ks[5], (4 * Hh, MM_EMBEDDINGS_DIM), Hh),
        "w_hh": u(ks[6], (4 * Hh, Hh), Hh),
        "b_ih": u(ks[7], (4 * Hh,), Hh),
        "b_hh": u(ks[8], (4 * Hh,), Hh),
        "policy_w": u(ks[9], (n_actions, feat_dim), feat_dim),
        "policy_b": u(ks[10], (n_actions,), feat_dim),
        "value_w": u(ks[11], (1, feat_dim), feat_dim),
        "value_b": u(ks[12], (1,), feat_dim),
    }


def prepare_params(params, input_shape):
    """One-time weight prep: bf16 casts, layout permutes, scale folding, head fusion."""
    C, H, W = input_shape
    (_h1, _w1), (h2, w2) = conv_out_dims(H, W)
    conv_out_size = 64 * h2 * w2
    n_actions = params["policy_w"].shape[0]

    # conv1: fold the 1/256 input scale into the weight; rows in (C, kh, kw) order.
    w1m = (params["conv1_w"].reshape(64, -1).T / 256.0).astype(jnp.bfloat16)
    # conv2: NHWC patches -> weight rows in (kh, kw, C_in) order, columns = out ch.
    w2m = params["conv2_w"].transpose(2, 3, 1, 0).reshape(-1, 64).astype(jnp.bfloat16)

    # heads: permute conv-feature columns from the PyTorch NCHW flatten to our NHWC
    # flatten (exact same semantics), fuse policy+value, pad N to a lane-dense 128.
    perm = jnp.arange(conv_out_size).reshape(64, h2, w2).transpose(1, 2, 0).reshape(-1)

    def permute_cols(w):
        return jnp.concatenate([w[:, :conv_out_size][:, perm],
                                w[:, conv_out_size:]], axis=1)

    head_w = jnp.concatenate([permute_cols(params["policy_w"]),
                              permute_cols(params["value_w"])], axis=0).T
    head_b = jnp.concatenate([params["policy_b"], params["value_b"]])
    n_out = n_actions + 1
    n_pad = ((n_out + 127) // 128) * 128
    head_w_pad = jnp.zeros((head_w.shape[0], n_pad), jnp.float32).at[:, :n_out].set(head_w)
    head_b_pad = jnp.zeros((n_pad,), jnp.float32).at[:n_out].set(head_b)

    return {
        "w1m": w1m, "b1": params["conv1_b"].astype(jnp.float32),
        "w2m": w2m, "b2": params["conv2_b"].astype(jnp.float32),
        "emb": params["emb"].astype(jnp.bfloat16),
        "w_ih_t": params["w_ih"].T.astype(jnp.bfloat16),        # (E, 4H)
        "w_hh_t": params["w_hh"].T.astype(jnp.bfloat16),        # (H, 4H)
        "lstm_b": (params["b_ih"] + params["b_hh"]).astype(jnp.float32),
        "head_w": head_w_pad.astype(jnp.bfloat16),
        "head_b": head_b_pad,
    }


@functools.partial(jax.jit, static_argnames=("n_actions",))
def forward(kp, x_img, tokens, lengths, *, n_actions):
    """x_img: (B,C,H,W) uint8; tokens: (B,T) int32; lengths: (B,) int32."""
    B = x_img.shape[0]

    # --- conv path (1/256 folded into conv1 weights; NHWC throughout) ---
    p1, h1, w1 = patches_conv1(x_img.astype(jnp.bfloat16))    # uint8 values exact in bf16
    c1 = matmul_bias(p1, kp["w1m"], kp["b1"], relu=True, out_dtype=jnp.bfloat16)
    c1 = c1.reshape(B, h1, w1, 64)                            # NHWC, no transpose back

    p2, h2, w2 = im2col_nhwc(c1, 3, 3, 2)
    c2 = matmul_bias(p2, kp["w2m"], kp["b2"], relu=True)
    conv_out = c2.reshape(B, h2 * w2 * 64)                    # NHWC flatten (head cols permuted)

    # --- text path: embedding gather + hoisted input projection + LSTM recurrence ---
    # TODO(synk): embedding lookup is a plain gather; kept in JAX glue.
    T = tokens.shape[1]
    emb = kp["emb"][tokens]                                   # (B, T, E) bf16
    x_tbe = emb.transpose(1, 0, 2)                            # (T, B, E)
    gx = matmul_bias(x_tbe.reshape(T * B, MM_EMBEDDINGS_DIM), kp["w_ih_t"], kp["lstm_b"])
    gx = gx.reshape(T, B, 4 * MM_HIDDEN_SIZE)                 # f32 gate pre-activations
    h_n, c_n = lstm_final_state(gx, lengths, kp["w_hh_t"])

    # --- fused policy+value head (lane-dense 128-padded output) ---
    feats = jnp.concatenate([conv_out.astype(jnp.bfloat16),
                             h_n.astype(jnp.bfloat16),
                             c_n.astype(jnp.bfloat16)], axis=1)
    head = matmul_bias(feats, kp["head_w"], kp["head_b"])
    return head[:, :n_actions], head[:, n_actions:n_actions + 1]


if __name__ == "__main__":
    key = jax.random.PRNGKey(0)
    k_img, k_tok, k_par = jax.random.split(key, 3)

    B, C, H, W = 2, 4, 16, 16          # -> conv1: 3x3, conv2: 1x1, conv_out = 64
    T = 6
    n_actions = 5

    x_img = jax.random.randint(k_img, (B, C, H, W), 0, 256, dtype=jnp.int32).astype(jnp.uint8)
    tokens = jax.random.randint(k_tok, (B, T), 0, MM_MAX_DICT_SIZE, dtype=jnp.int32)
    lengths = jnp.array([6, 4], dtype=jnp.int32)   # variable-length (PackedSequence)

    params = init_params(k_par, (C, H, W), n_actions)
    kparams = prepare_params(params, (C, H, W))

    policy, value = forward(kparams, x_img, tokens, lengths, n_actions=n_actions)
    jax.block_until_ready((policy, value))

    assert policy.shape == (B, n_actions) and value.shape == (B, 1)
    print("KERNEL_OK")
</pallas_src>

<mosaic_0001>
module attributes {stable_mosaic.version = 11 : i64} {
  func.func @_matmul_bias_kernel(%arg0: i32, %arg1: memref<18x100xbf16, #tpu.memory_space<vmem>>, %arg2: memref<100x64xbf16, #tpu.memory_space<vmem>>, %arg3: memref<1x64xf32, #tpu.memory_space<vmem>>, %arg4: memref<18x64xbf16, #tpu.memory_space<vmem>>) attributes {dimension_semantics = [#tpu.dimension_semantics<parallel>], iteration_bounds = array<i64: 1>, scalar_prefetch = 0 : i64, scratch_operands = 0 : i64, tpu.core_type = #tpu.core_type<tc>, window_params = [{transform_indices = @transform_0, window_bounds = array<i64: 18, 100>}, {pipeline_mode = #tpu.pipeline_mode<synchronous>, transform_indices = @transform_1, window_bounds = array<i64: 100, 64>}, {pipeline_mode = #tpu.pipeline_mode<synchronous>, transform_indices = @transform_2, window_bounds = array<i64: 1, 64>}, {transform_indices = @transform_3, window_bounds = array<i64: 18, 64>}]} {
    %c0 = arith.constant 0 : index
    %c0_0 = arith.constant 0 : index
    %0 = vector.load %arg1[%c0, %c0_0] : memref<18x100xbf16, #tpu.memory_space<vmem>>, vector<18x100xbf16>
    %c0_1 = arith.constant 0 : index
    %c0_2 = arith.constant 0 : index
    %1 = vector.load %arg2[%c0_1, %c0_2] : memref<100x64xbf16, #tpu.memory_space<vmem>>, vector<100x64xbf16>
    %cst = arith.constant dense<0.000000e+00> : vector<18x64xf32>
    %2 = tpu.matmul %0, %1, %cst {dimension_numbers = #tpu.dot_dimension_numbers<[1], [0], [0], [1], [0, 0, 1, 1], [], []>} : vector<18x100xbf16>, vector<100x64xbf16>, vector<18x64xf32> -> vector<18x64xf32>
    %c0_3 = arith.constant 0 : index
    %c0_4 = arith.constant 0 : index
    %3 = vector.load %arg3[%c0_3, %c0_4] : memref<1x64xf32, #tpu.memory_space<vmem>>, vector<1x64xf32>
    %4 = vector.broadcast %3 : vector<1x64xf32> to vector<18x64xf32>
    %5 = arith.addf %2, %4 : vector<18x64xf32>
    %cst_5 = arith.constant 0.000000e+00 : f32
    %6 = vector.broadcast %cst_5 : f32 to vector<18x64xf32>
    %7 = arith.maximumf %5, %6 : vector<18x64xf32>
    %8 = arith.truncf %7 : vector<18x64xf32> to vector<18x64xbf16>
    %c0_6 = arith.constant 0 : index
    %c0_7 = arith.constant 0 : index
    %9 = vector.load %arg4[%c0_6, %c0_7] : memref<18x64xbf16, #tpu.memory_space<vmem>>, vector<18x64xbf16>
    tpu.vector_store %arg4[%c0_6, %c0_7], %8 {strides = array<i32>} : memref<18x64xbf16, #tpu.memory_space<vmem>>, vector<18x64xbf16>,
    return
  }
  func.func @transform_0(%arg0: i32) -> (i32, i32) {
    %c0_i32 = arith.constant 0 : i32
    %c0_i32_0 = arith.constant 0 : i32
    return %arg0, %c0_i32 : i32, i32
  }
  func.func @transform_1(%arg0: i32) -> (i32, i32) {
    %c0_i32 = arith.constant 0 : i32
    %c0_i32_0 = arith.constant 0 : i32
    %c0_i32_1 = arith.constant 0 : i32
    return %c0_i32, %c0_i32_0 : i32, i32
  }
  func.func @transform_2(%arg0: i32) -> (i32, i32) {
    %c0_i32 = arith.constant 0 : i32
    %c0_i32_0 = arith.constant 0 : i32
    %c0_i32_1 = arith.constant 0 : i32
    return %c0_i32, %c0_i32_0 : i32, i32
  }
  func.func @transform_3(%arg0: i32) -> (i32, i32) {
    %c0_i32 = arith.constant 0 : i32
    %c0_i32_0 = arith.constant 0 : i32
    return %arg0, %c0_i32 : i32, i32
  }
}

module attributes {stable_mosaic.version = 11 : i64} {
  func.func @_matmul_bias_kernel(%arg0: i32, %arg1: memref<2x576xbf16, #tpu.memory_space<vmem>>, %arg2: memref<576x64xbf16, #tpu.memory_space<vmem>>, %arg3: memref<1x64xf32, #tpu.memory_space<vmem>>, %arg4: memref<2x64xf32, #tpu.memory_space<vmem>>) attributes {dimension_semantics = [#tpu.dimension_semantics<parallel>], iteration_bounds = array<i64: 1>, scalar_prefetch = 0 : i64, scratch_operands = 0 : i64, tpu.core_type = #tpu.core_type<tc>, window_params = [{transform_indices = @transform_0, window_bounds = array<i64: 2, 576>}, {pipeline_mode = #tpu.pipeline_mode<synchronous>, transform_indices = @transform_1, window_bounds = array<i64: 576, 64>}, {pipeline_mode = #tpu.pipeline_mode<synchronous>, transform_indices = @transform_2, window_bounds = array<i64: 1, 64>}, {transform_indices = @transform_3, window_bounds = array<i64: 2, 64>}]} {
    %c0 = arith.constant 0 : index
    %c0_0 = arith.constant 0 : index
    %0 = vector.load %arg1[%c0, %c0_0] : memref<2x576xbf16, #tpu.memory_space<vmem>>, vector<2x576xbf16>
    %c0_1 = arith.constant 0 : index
    %c0_2 = arith.constant 0 : index
    %1 = vector.load %arg2[%c0_1, %c0_2] : memref<576x64xbf16, #tpu.memory_space<vmem>>, vector<576x64xbf16>
    %cst = arith.constant dense<0.000000e+00> : vector<2x64xf32>
    %2 = tpu.matmul %0, %1, %cst {dimension_numbers = #tpu.dot_dimension_numbers<[1], [0], [0], [1], [0, 0, 1, 1], [], []>} : vector<2x576xbf16>, vector<576x64xbf16>, vector<2x64xf32> -> vector<2x64xf32>
    %c0_3 = arith.constant 0 : index
    %c0_4 = arith.constant 0 : index
    %3 = vector.load %arg3[%c0_3, %c0_4] : memref<1x64xf32, #tpu.memory_space<vmem>>, vector<1x64xf32>
    %4 = vector.broadcast %3 : vector<1x64xf32> to vector<2x64xf32>
    %5 = arith.addf %2, %4 : vector<2x64xf32>
    %cst_5 = arith.constant 0.000000e+00 : f32
    %6 = vector.broadcast %cst_5 : f32 to vector<2x64xf32>
    %7 = arith.maximumf %5, %6 : vector<2x64xf32>
    %c0_6 = arith.constant 0 : index
    %c0_7 = arith.constant 0 : index
    %8 = vector.load %arg4[%c0_6, %c0_7] : memref<2x64xf32, #tpu.memory_space<vmem>>, vector<2x64xf32>
    tpu.vector_store %arg4[%c0_6, %c0_7], %7 {strides = array<i32>} : memref<2x64xf32, #tpu.memory_space<vmem>>, vector<2x64xf32>,
    return
  }
  func.func @transform_0(%arg0: i32) -> (i32, i32) {
    %c0_i32 = arith.constant 0 : i32
    %c0_i32_0 = arith.constant 0 : i32
    return %arg0, %c0_i32 : i32, i32
  }
  func.func @transform_1(%arg0: i32) -> (i32, i32) {
    %c0_i32 = arith.constant 0 : i32
    %c0_i32_0 = arith.constant 0 : i32
    %c0_i32_1 = arith.constant 0 : i32
    return %c0_i32, %c0_i32_0 : i32, i32
  }
  func.func @transform_2(%arg0: i32) -> (i32, i32) {
    %c0_i32 = arith.constant 0 : i32
    %c0_i32_0 = arith.constant 0 : i32
    %c0_i32_1 = arith.constant 0 : i32
    return %c0_i32, %c0_i32_0 : i32, i32
  }
  func.func @transform_3(%arg0: i32) -> (i32, i32) {
    %c0_i32 = arith.constant 0 : i32
    %c0_i32_0 = arith.constant 0 : i32
    return %arg0, %c0_i32 : i32, i32
  }
}

module attributes {stable_mosaic.version = 11 : i64} {
  func.func @_matmul_bias_kernel(%arg0: i32, %arg1: memref<2x320xbf16, #tpu.memory_space<vmem>>, %arg2: memref<320x128xbf16, #tpu.memory_space<vmem>>, %arg3: memref<1x128xf32, #tpu.memory_space<vmem>>, %arg4: memref<2x128xf32, #tpu.memory_space<vmem>>) attributes {dimension_semantics = [#tpu.dimension_semantics<parallel>], iteration_bounds = array<i64: 1>, scalar_prefetch = 0 : i64, scratch_operands = 0 : i64, tpu.core_type = #tpu.core_type<tc>, window_params = [{transform_indices = @transform_0, window_bounds = array<i64: 2, 320>}, {pipeline_mode = #tpu.pipeline_mode<synchronous>, transform_indices = @transform_1, window_bounds = array<i64: 320, 128>}, {pipeline_mode = #tpu.pipeline_mode<synchronous>, transform_indices = @transform_2, window_bounds = array<i64: 1, 128>}, {transform_indices = @transform_3, window_bounds = array<i64: 2, 128>}]} {
    %c0 = arith.constant 0 : index
    %c0_0 = arith.constant 0 : index
    %0 = vector.load %arg1[%c0, %c0_0] : memref<2x320xbf16, #tpu.memory_space<vmem>>, vector<2x320xbf16>
    %c0_1 = arith.constant 0 : index
    %c0_2 = arith.constant 0 : index
    %1 = vector.load %arg2[%c0_1, %c0_2] : memref<320x128xbf16, #tpu.memory_space<vmem>>, vector<320x128xbf16>
    %cst = arith.constant dense<0.000000e+00> : vector<2x128xf32>
    %2 = tpu.matmul %0, %1, %cst {dimension_numbers = #tpu.dot_dimension_numbers<[1], [0], [0], [1], [0, 0, 1, 1], [], []>} : vector<2x320xbf16>, vector<320x128xbf16>, vector<2x128xf32> -> vector<2x128xf32>
    %c0_3 = arith.constant 0 : index
    %c0_4 = arith.constant 0 : index
    %3 = vector.load %arg3[%c0_3, %c0_4] : memref<1x128xf32, #tpu.memory_space<vmem>>, vector<1x128xf32>
    %4 = vector.broadcast %3 : vector<1x128xf32> to vector<2x128xf32>
    %5 = arith.addf %2, %4 : vector<2x128xf32>
    %c0_5 = arith.constant 0 : index
    %c0_6 = arith.constant 0 : index
    %6 = vector.load %arg4[%c0_5, %c0_6] : memref<2x128xf32, #tpu.memory_space<vmem>>, vector<2x128xf32>
    tpu.vector_store %arg4[%c0_5, %c0_6], %5 {strides = array<i32>} : memref<2x128xf32, #tpu.memory_space<vmem>>, vector<2x128xf32>,
    return
  }
  func.func @transform_0(%arg0: i32) -> (i32, i32) {
    %c0_i32 = arith.constant 0 : i32
    %c0_i32_0 = arith.constant 0 : i32
    return %arg0, %c0_i32 : i32, i32
  }
  func.func @transform_1(%arg0: i32) -> (i32, i32) {
    %c0_i32 = arith.constant 0 : i32
    %c0_i32_0 = arith.constant 0 : i32
    %c0_i32_1 = arith.constant 0 : i32
    return %c0_i32, %c0_i32_0 : i32, i32
  }
  func.func @transform_2(%arg0: i32) -> (i32, i32) {
    %c0_i32 = arith.constant 0 : i32
    %c0_i32_0 = arith.constant 0 : i32
    %c0_i32_1 = arith.constant 0 : i32
    return %c0_i32, %c0_i32_0 : i32, i32
  }
  func.func @transform_3(%arg0: i32) -> (i32, i32) {
    %c0_i32 = arith.constant 0 : i32
    %c0_i32_0 = arith.constant 0 : i32
    return %arg0, %c0_i32 : i32, i32
  }
}

module attributes {stable_mosaic.version = 11 : i64} {
  func.func @_matmul_bias_kernel(%arg0: i32, %arg1: memref<12x50xbf16, #tpu.memory_space<vmem>>, %arg2: memref<50x512xbf16, #tpu.memory_space<vmem>>, %arg3: memref<1x512xf32, #tpu.memory_space<vmem>>, %arg4: memref<12x512xf32, #tpu.memory_space<vmem>>) attributes {dimension_semantics = [#tpu.dimension_semantics<parallel>], iteration_bounds = array<i64: 1>, scalar_prefetch = 0 : i64, scratch_operands = 0 : i64, tpu.core_type = #tpu.core_type<tc>, window_params = [{transform_indices = @transform_0, window_bounds = array<i64: 12, 50>}, {pipeline_mode = #tpu.pipeline_mode<synchronous>, transform_indices = @transform_1, window_bounds = array<i64: 50, 512>}, {pipeline_mode = #tpu.pipeline_mode<synchronous>, transform_indices = @transform_2, window_bounds = array<i64: 1, 512>}, {transform_indices = @transform_3, window_bounds = array<i64: 12, 512>}]} {
    %c0 = arith.constant 0 : index
    %c0_0 = arith.constant 0 : index
    %0 = vector.load %arg1[%c0, %c0_0] : memref<12x50xbf16, #tpu.memory_space<vmem>>, vector<12x50xbf16>
    %c0_1 = arith.constant 0 : index
    %c0_2 = arith.constant 0 : index
    %1 = vector.load %arg2[%c0_1, %c0_2] : memref<50x512xbf16, #tpu.memory_space<vmem>>, vector<50x512xbf16>
    %cst = arith.constant dense<0.000000e+00> : vector<12x512xf32>
    %2 = tpu.matmul %0, %1, %cst {dimension_numbers = #tpu.dot_dimension_numbers<[1], [0], [0], [1], [0, 0, 1, 1], [], []>} : vector<12x50xbf16>, vector<50x512xbf16>, vector<12x512xf32> -> vector<12x512xf32>
    %c0_3 = arith.constant 0 : index
    %c0_4 = arith.constant 0 : index
    %3 = vector.load %arg3[%c0_3, %c0_4] : memref<1x512xf32, #tpu.memory_space<vmem>>, vector<1x512xf32>
    %4 = vector.broadcast %3 : vector<1x512xf32> to vector<12x512xf32>
    %5 = arith.addf %2, %4 : vector<12x512xf32>
    %c0_5 = arith.constant 0 : index
    %c0_6 = arith.constant 0 : index
    %6 = vector.load %arg4[%c0_5, %c0_6] : memref<12x512xf32, #tpu.memory_space<vmem>>, vector<12x512xf32>
    tpu.vector_store %arg4[%c0_5, %c0_6], %5 {strides = array<i32>} : memref<12x512xf32, #tpu.memory_space<vmem>>, vector<12x512xf32>,
    return
  }
  func.func @transform_0(%arg0: i32) -> (i32, i32) {
    %c0_i32 = arith.constant 0 : i32
    %c0_i32_0 = arith.constant 0 : i32
    return %arg0, %c0_i32 : i32, i32
  }
  func.func @transform_1(%arg0: i32) -> (i32, i32) {
    %c0_i32 = arith.constant 0 : i32
    %c0_i32_0 = arith.constant 0 : i32
    %c0_i32_1 = arith.constant 0 : i32
    return %c0_i32, %c0_i32_0 : i32, i32
  }
  func.func @transform_2(%arg0: i32) -> (i32, i32) {
    %c0_i32 = arith.constant 0 : i32
    %c0_i32_0 = arith.constant 0 : i32
    %c0_i32_1 = arith.constant 0 : i32
    return %c0_i32, %c0_i32_0 : i32, i32
  }
  func.func @transform_3(%arg0: i32) -> (i32, i32) {
    %c0_i32 = arith.constant 0 : i32
    %c0_i32_0 = arith.constant 0 : i32
    return %arg0, %c0_i32 : i32, i32
  }
}

module attributes {stable_mosaic.version = 11 : i64} {
  func.func @_lstm_kernel(%arg0: memref<6x2x512xf32, #tpu.memory_space<vmem>>, %arg1: memref<2x1xi32, #tpu.memory_space<vmem>>, %arg2: memref<128x512xbf16, #tpu.memory_space<vmem>>, %arg3: memref<2x128xf32, #tpu.memory_space<vmem>>, %arg4: memref<2x128xf32, #tpu.memory_space<vmem>>) attributes {dimension_semantics = [], scalar_prefetch = 0 : i64, scratch_operands = 0 : i64, tpu.core_type = #tpu.core_type<tc>} {
    %c0 = arith.constant 0 : index
    %c0_0 = arith.constant 0 : index
    %0 = vector.load %arg1[%c0, %c0_0] : memref<2x1xi32, #tpu.memory_space<vmem>>, vector<2x1xi32>
    %cst = arith.constant 0.000000e+00 : f32
    %1 = vector.broadcast %cst : f32 to vector<2x128xf32>
    %cst_1 = arith.constant 0.000000e+00 : f32
    %2 = vector.broadcast %cst_1 : f32 to vector<2x128xf32>
    %c0_i32 = arith.constant 0 : i32
    %3 = arith.index_cast %c0_i32 : i32 to index
    %c0_2 = arith.constant 0 : index
    %c0_3 = arith.constant 0 : index
    %4 = vector.load %arg0[%3, %c0_2, %c0_3] : memref<6x2x512xf32, #tpu.memory_space<vmem>>, vector<1x2x512xf32>
    %5 = vector.shape_cast %4 : vector<1x2x512xf32> to vector<2x512xf32>
    %6 = arith.truncf %1 : vector<2x128xf32> to vector<2x128xbf16>
    %c0_4 = arith.constant 0 : index
    %c0_5 = arith.constant 0 : index
    %7 = vector.load %arg2[%c0_4, %c0_5] : memref<128x512xbf16, #tpu.memory_space<vmem>>, vector<128x512xbf16>
    %cst_6 = arith.constant dense<0.000000e+00> : vector<2x512xf32>
    %8 = tpu.matmul %6, %7, %cst_6 {dimension_numbers = #tpu.dot_dimension_numbers<[1], [0], [0], [1], [0, 0, 1, 1], [], []>} : vector<2x128xbf16>, vector<128x512xbf16>, vector<2x512xf32> -> vector<2x512xf32>
    %9 = arith.addf %5, %8 : vector<2x512xf32>
    %10 = vector.extract_strided_slice %9 {offsets = [0, 0], sizes = [2, 128], strides = [1, 1]} : vector<2x512xf32> to vector<2x128xf32>
    %11 = arith.negf %10 : vector<2x128xf32>
    %12 = math.exp %11 : vector<2x128xf32>
    %cst_7 = arith.constant 1.000000e+00 : f32
    %13 = vector.broadcast %cst_7 : f32 to vector<2x128xf32>
    %14 = arith.addf %13, %12 : vector<2x128xf32>
    %15 = arith.divf %13, %14 : vector<2x128xf32>
    %16 = vector.extract_strided_slice %9 {offsets = [0, 128], sizes = [2, 128], strides = [1, 1]} : vector<2x512xf32> to vector<2x128xf32>
    %17 = arith.negf %16 : vector<2x128xf32>
    %18 = math.exp %17 : vector<2x128xf32>
    %cst_8 = arith.constant 1.000000e+00 : f32
    %19 = vector.broadcast %cst_8 : f32 to vector<2x128xf32>
    %20 = arith.addf %19, %18 : vector<2x128xf32>
    %21 = arith.divf %19, %20 : vector<2x128xf32>
    %22 = vector.extract_strided_slice %9 {offsets = [0, 256], sizes = [2, 128], strides = [1, 1]} : vector<2x512xf32> to vector<2x128xf32>
    %23 = math.tanh %22 : vector<2x128xf32>
    %24 = vector.extract_strided_slice %9 {offsets = [0, 384], sizes = [2, 128], strides = [1, 1]} : vector<2x512xf32> to vector<2x128xf32>
    %25 = arith.negf %24 : vector<2x128xf32>
    %26 = math.exp %25 : vector<2x128xf32>
    %cst_9 = arith.constant 1.000000e+00 : f32
    %27 = vector.broadcast %cst_9 : f32 to vector<2x128xf32>
    %28 = arith.addf %27, %26 : vector<2x128xf32>
    %29 = arith.divf %27, %28 : vector<2x128xf32>
    %30 = arith.mulf %21, %2 : vector<2x128xf32>
    %31 = arith.mulf %15, %23 : vector<2x128xf32>
    %32 = arith.addf %30, %31 : vector<2x128xf32>
    %33 = math.tanh %32 : vector<2x128xf32>
    %34 = arith.mulf %29, %33 : vector<2x128xf32>
    %35 = vector.broadcast %c0_i32 : i32 to vector<2x1xi32>
    %36 = arith.cmpi slt, %35, %0 : vector<2x1xi32>
    %37 = vector.shape_cast %36 : vector<2x1xi1> to vector<2x1xi1>
    %38 = vector.broadcast %37 : vector<2x1xi1> to vector<2x128xi1>
    %39 = arith.select %38, %34, %1 : vector<2x128xi1>, vector<2x128xf32>
    %40 = vector.shape_cast %36 : vector<2x1xi1> to vector<2x1xi1>
    %41 = vector.broadcast %40 : vector<2x1xi1> to vector<2x128xi1>
    %42 = arith.select %41, %32, %2 : vector<2x128xi1>, vector<2x128xf32>
    %c1_i32 = arith.constant 1 : i32
    %43 = arith.index_cast %c1_i32 : i32 to index
    %c0_10 = arith.constant 0 : index
    %c0_11 = arith.constant 0 : index
    %44 = vector.load %arg0[%43, %c0_10, %c0_11] : memref<6x2x512xf32, #tpu.memory_space<vmem>>, vector<1x2x512xf32>
    %45 = vector.shape_cast %44 : vector<1x2x512xf32> to vector<2x512xf32>
    %46 = arith.truncf %39 : vector<2x128xf32> to vector<2x128xbf16>
    %c0_12 = arith.constant 0 : index
    %c0_13 = arith.constant 0 : index
    %47 = vector.load %arg2[%c0_12, %c0_13] : memref<128x512xbf16, #tpu.memory_space<vmem>>, vector<128x512xbf16>
    %cst_14 = arith.constant dense<0.000000e+00> : vector<2x512xf32>
    %48 = tpu.matmul %46, %47, %cst_14 {dimension_numbers = #tpu.dot_dimension_numbers<[1], [0], [0], [1], [0, 0, 1, 1], [], []>} : vector<2x128xbf16>, vector<128x512xbf16>, vector<2x512xf32> -> vector<2x512xf32>
    %49 = arith.addf %45, %48 : vector<2x512xf32>
    %50 = vector.extract_strided_slice %49 {offsets = [0, 0], sizes = [2, 128], strides = [1, 1]} : vector<2x512xf32> to vector<2x128xf32>
    %51 = arith.negf %50 : vector<2x128xf32>
    %52 = math.exp %51 : vector<2x128xf32>
    %cst_15 = arith.constant 1.000000e+00 : f32
    %53 = vector.broadcast %cst_15 : f32 to vector<2x128xf32>
    %54 = arith.addf %53, %52 : vector<2x128xf32>
    %55 = arith.divf %53, %54 : vector<2x128xf32>
    %56 = vector.extract_strided_slice %49 {offsets = [0, 128], sizes = [2, 128], strides = [1, 1]} : vector<2x512xf32> to vector<2x128xf32>
    %57 = arith.negf %56 : vector<2x128xf32>
    %58 = math.exp %57 : vector<2x128xf32>
    %cst_16 = arith.constant 1.000000e+00 : f32
    %59 = vector.broadcast %cst_16 : f32 to vector<2x128xf32>
    %60 = arith.addf %59, %58 : vector<2x128xf32>
    %61 = arith.divf %59, %60 : vector<2x128xf32>
    %62 = vector.extract_strided_slice %49 {offsets = [0, 256], sizes = [2, 128], strides = [1, 1]} : vector<2x512xf32> to vector<2x128xf32>
    %63 = math.tanh %62 : vector<2x128xf32>
    %64 = vector.extract_strided_slice %49 {offsets = [0, 384], sizes = [2, 128], strides = [1, 1]} : vector<2x512xf32> to vector<2x128xf32>
    %65 = arith.negf %64 : vector<2x128xf32>
    %66 = math.exp %65 : vector<2x128xf32>
    %cst_17 = arith.constant 1.000000e+00 : f32
    %67 = vector.broadcast %cst_17 : f32 to vector<2x128xf32>
    %68 = arith.addf %67, %66 : vector<2x128xf32>
    %69 = arith.divf %67, %68 : vector<2x128xf32>
    %70 = arith.mulf %61, %42 : vector<2x128xf32>
    %71 = arith.mulf %55, %63 : vector<2x128xf32>
    %72 = arith.addf %70, %71 : vector<2x128xf32>
    %73 = math.tanh %72 : vector<2x128xf32>
    %74 = arith.mulf %69, %73 : vector<2x128xf32>
    %75 = vector.broadcast %c1_i32 : i32 to vector<2x1xi32>
    %76 = arith.cmpi slt, %75, %0 : vector<2x1xi32>
    %77 = vector.shape_cast %76 : vector<2x1xi1> to vector<2x1xi1>
    %78 = vector.broadcast %77 : vector<2x1xi1> to vector<2x128xi1>
    %79 = arith.select %78, %74, %39 : vector<2x128xi1>, vector<2x128xf32>
    %80 = vector.shape_cast %76 : vector<2x1xi1> to vector<2x1xi1>
    %81 = vector.broadcast %80 : vector<2x1xi1> to vector<2x128xi1>
    %82 = arith.select %81, %72, %42 : vector<2x128xi1>, vector<2x128xf32>
    %c2_i32 = arith.constant 2 : i32
    %83 = arith.index_cast %c2_i32 : i32 to index
    %c0_18 = arith.constant 0 : index
    %c0_19 = arith.constant 0 : index
    %84 = vector.load %arg0[%83, %c0_18, %c0_19] : memref<6x2x512xf32, #tpu.memory_space<vmem>>, vector<1x2x512xf32>
    %85 = vector.shape_cast %84 : vector<1x2x512xf32> to vector<2x512xf32>
    %86 = arith.truncf %79 : vector<2x128xf32> to vector<2x128xbf16>
    %c0_20 = arith.constant 0 : index
    %c0_21 = arith.constant 0 : index
    %87 = vector.load %arg2[%c0_20, %c0_21] : memref<128x512xbf16, #tpu.memory_space<vmem>>, vector<128x512xbf16>
    %cst_22 = arith.constant dense<0.000000e+00> : vector<2x512xf32>
    %88 = tpu.matmul %86, %87, %cst_22 {dimension_numbers = #tpu.dot_dimension_numbers<[1], [0], [0], [1], [0, 0, 1, 1], [], []>} : vector<2x128xbf16>, vector<128x512xbf16>, vector<2x512xf32> -> vector<2x512xf32>
    %89 = arith.addf %85, %88 : vector<2x512xf32>
    %90 = vector.extract_strided_slice %89 {offsets = [0, 0], sizes = [2, 128], strides = [1, 1]} : vector<2x512xf32> to vector<2x128xf32>
    %91 = arith.negf %90 : vector<2x128xf32>
    %92 = math.exp %91 : vector<2x128xf32>
    %cst_23 = arith.constant 1.000000e+00 : f32
    %93 = vector.broadcast %cst_23 : f32 to vector<2x128xf32>
    %94 = arith.addf %93, %92 : vector<2x128xf32>
    %95 = arith.divf %93, %94 : vector<2x128xf32>
    %96 = vector.extract_strided_slice %89 {offsets = [0, 128], sizes = [2, 128], strides = [1, 1]} : vector<2x512xf32> to vector<2x128xf32>
    %97 = arith.negf %96 : vector<2x128xf32>
    %98 = math.exp %97 : vector<2x128xf32>
    %cst_24 = arith.constant 1.000000e+00 : f32
    %99 = vector.broadcast %cst_24 : f32 to vector<2x128xf32>
    %100 = arith.addf %99, %98 : vector<2x128xf32>
    %101 = arith.divf %99, %100 : vector<2x128xf32>
    %102 = vector.extract_strided_slice %89 {offsets = [0, 256], sizes = [2, 128], strides = [1, 1]} : vector<2x512xf32> to vector<2x128xf32>
    %103 = math.tanh %102 : vector<2x128xf32>
    %104 = vector.extract_strided_slice %89 {offsets = [0, 384], sizes = [2, 128], strides = [1, 1]} : vector<2x512xf32> to vector<2x128xf32>
    %105 = arith.negf %104 : vector<2x128xf32>
    %106 = math.exp %105 : vector<2x128xf32>
    %cst_25 = arith.constant 1.000000e+00 : f32
    %107 = vector.broadcast %cst_25 : f32 to vector<2x128xf32>
    %108 = arith.addf %107, %106 : vector<2x128xf32>
    %109 = arith.divf %107, %108 : vector<2x128xf32>
    %110 = arith.mulf %101, %82 : vector<2x128xf32>
    %111 = arith.mulf %95, %103 : vector<2x128xf32>
    %112 = arith.addf %110, %111 : vector<2x128xf32>
    %113 = math.tanh %112 : vector<2x128xf32>
    %114 = arith.mulf %109, %113 : vector<2x128xf32>
    %115 = vector.broadcast %c2_i32 : i32 to vector<2x1xi32>
    %116 = arith.cmpi slt, %115, %0 : vector<2x1xi32>
    %117 = vector.shape_cast %116 : vector<2x1xi1> to vector<2x1xi1>
    %118 = vector.broadcast %117 : vector<2x1xi1> to vector<2x128xi1>
    %119 = arith.select %118, %114, %79 : vector<2x128xi1>, vector<2x128xf32>
    %120 = vector.shape_cast %116 : vector<2x1xi1> to vector<2x1xi1>
    %121 = vector.broadcast %120 : vector<2x1xi1> to vector<2x128xi1>
    %122 = arith.select %121, %112, %82 : vector<2x128xi1>, vector<2x128xf32>
    %c3_i32 = arith.constant 3 : i32
    %123 = arith.index_cast %c3_i32 : i32 to index
    %c0_26 = arith.constant 0 : index
    %c0_27 = arith.constant 0 : index
    %124 = vector.load %arg0[%123, %c0_26, %c0_27] : memref<6x2x512xf32, #tpu.memory_space<vmem>>, vector<1x2x512xf32>
    %125 = vector.shape_cast %124 : vector<1x2x512xf32> to vector<2x512xf32>
    %126 = arith.truncf %119 : vector<2x128xf32> to vector<2x128xbf16>
    %c0_28 = arith.constant 0 : index
    %c0_29 = arith.constant 0 : index
    %127 = vector.load %arg2[%c0_28, %c0_29] : memref<128x512xbf16, #tpu.memory_space<vmem>>, vector<128x512xbf16>
    %cst_30 = arith.constant dense<0.000000e+00> : vector<2x512xf32>
    %128 = tpu.matmul %126, %127, %cst_30 {dimension_numbers = #tpu.dot_dimension_numbers<[1], [0], [0], [1], [0, 0, 1, 1], [], []>} : vector<2x128xbf16>, vector<128x512xbf16>, vector<2x512xf32> -> vector<2x512xf32>
    %129 = arith.addf %125, %128 : vector<2x512xf32>
    %130 = vector.extract_strided_slice %129 {offsets = [0, 0], sizes = [2, 128], strides = [1, 1]} : vector<2x512xf32> to vector<2x128xf32>
    %131 = arith.negf %130 : vector<2x128xf32>
    %132 = math.exp %131 : vector<2x128xf32>
    %cst_31 = arith.constant 1.000000e+00 : f32
    %133 = vector.broadcast %cst_31 : f32 to vector<2x128xf32>
    %134 = arith.addf %133, %132 : vector<2x128xf32>
    %135 = arith.divf %133, %134 : vector<2x128xf32>
    %136 = vector.extract_strided_slice %129 {offsets = [0, 128], sizes = [2, 128], strides = [1, 1]} : vector<2x512xf32> to vector<2x128xf32>
    %137 = arith.negf %136 : vector<2x128xf32>
    %138 = math.exp %137 : vector<2x128xf32>
    %cst_32 = arith.constant 1.000000e+00 : f32
    %139 = vector.broadcast %cst_32 : f32 to vector<2x128xf32>
    %140 = arith.addf %139, %138 : vector<2x128xf32>
    %141 = arith.divf %139, %140 : vector<2x128xf32>
    %142 = vector.extract_strided_slice %129 {offsets = [0, 256], sizes = [2, 128], strides = [1, 1]} : vector<2x512xf32> to vector<2x128xf32>
    %143 = math.tanh %142 : vector<2x128xf32>
    %144 = vector.extract_strided_slice %129 {offsets = [0, 384], sizes = [2, 128], strides = [1, 1]} : vector<2x512xf32> to vector<2x128xf32>
    %145 = arith.negf %144 : vector<2x128xf32>
    %146 = math.exp %145 : vector<2x128xf32>
    %cst_33 = arith.constant 1.000000e+00 : f32
    %147 = vector.broadcast %cst_33 : f32 to vector<2x128xf32>
    %148 = arith.addf %147, %146 : vector<2x128xf32>
    %149 = arith.divf %147, %148 : vector<2x128xf32>
    %150 = arith.mulf %141, %122 : vector<2x128xf32>
    %151 = arith.mulf %135, %143 : vector<2x128xf32>
    %152 = arith.addf %150, %151 : vector<2x128xf32>
    %153 = math.tanh %152 : vector<2x128xf32>
    %154 = arith.mulf %149, %153 : vector<2x128xf32>
    %155 = vector.broadcast %c3_i32 : i32 to vector<2x1xi32>
    %156 = arith.cmpi slt, %155, %0 : vector<2x1xi32>
    %157 = vector.shape_cast %156 : vector<2x1xi1> to vector<2x1xi1>
    %158 = vector.broadcast %157 : vector<2x1xi1> to vector<2x128xi1>
    %159 = arith.select %158, %154, %119 : vector<2x128xi1>, vector<2x128xf32>
    %160 = vector.shape_cast %156 : vector<2x1xi1> to vector<2x1xi1>
    %161 = vector.broadcast %160 : vector<2x1xi1> to vector<2x128xi1>
    %162 = arith.select %161, %152, %122 : vector<2x128xi1>, vector<2x128xf32>
    %c4_i32 = arith.constant 4 : i32
    %163 = arith.index_cast %c4_i32 : i32 to index
    %c0_34 = arith.constant 0 : index
    %c0_35 = arith.constant 0 : index
    %164 = vector.load %arg0[%163, %c0_34, %c0_35] : memref<6x2x512xf32, #tpu.memory_space<vmem>>, vector<1x2x512xf32>
    %165 = vector.shape_cast %164 : vector<1x2x512xf32> to vector<2x512xf32>
    %166 = arith.truncf %159 : vector<2x128xf32> to vector<2x128xbf16>
    %c0_36 = arith.constant 0 : index
    %c0_37 = arith.constant 0 : index
    %167 = vector.load %arg2[%c0_36, %c0_37] : memref<128x512xbf16, #tpu.memory_space<vmem>>, vector<128x512xbf16>
    %cst_38 = arith.constant dense<0.000000e+00> : vector<2x512xf32>
    %168 = tpu.matmul %166, %167, %cst_38 {dimension_numbers = #tpu.dot_dimension_numbers<[1], [0], [0], [1], [0, 0, 1, 1], [], []>} : vector<2x128xbf16>, vector<128x512xbf16>, vector<2x512xf32> -> vector<2x512xf32>
    %169 = arith.addf %165, %168 : vector<2x512xf32>
    %170 = vector.extract_strided_slice %169 {offsets = [0, 0], sizes = [2, 128], strides = [1, 1]} : vector<2x512xf32> to vector<2x128xf32>
    %171 = arith.negf %170 : vector<2x128xf32>
    %172 = math.exp %171 : vector<2x128xf32>
    %cst_39 = arith.constant 1.000000e+00 : f32
    %173 = vector.broadcast %cst_39 : f32 to vector<2x128xf32>
    %174 = arith.addf %173, %172 : vector<2x128xf32>
    %175 = arith.divf %173, %174 : vector<2x128xf32>
    %176 = vector.extract_strided_slice %169 {offsets = [0, 128], sizes = [2, 128], strides = [1, 1]} : vector<2x512xf32> to vector<2x128xf32>
    %177 = arith.negf %176 : vector<2x128xf32>
    %178 = math.exp %177 : vector<2x128xf32>
    %cst_40 = arith.constant 1.000000e+00 : f32
    %179 = vector.broadcast %cst_40 : f32 to vector<2x128xf32>
    %180 = arith.addf %179, %178 : vector<2x128xf32>
    %181 = arith.divf %179, %180 : vector<2x128xf32>
    %182 = vector.extract_strided_slice %169 {offsets = [0, 256], sizes = [2, 128], strides = [1, 1]} : vector<2x512xf32> to vector<2x128xf32>
    %183 = math.tanh %182 : vector<2x128xf32>
    %184 = vector.extract_strided_slice %169 {offsets = [0, 384], sizes = [2, 128], strides = [1, 1]} : vector<2x512xf32> to vector<2x128xf32>
    %185 = arith.negf %184 : vector<2x128xf32>
    %186 = math.exp %185 : vector<2x128xf32>
    %cst_41 = arith.constant 1.000000e+00 : f32
    %187 = vector.broadcast %cst_41 : f32 to vector<2x128xf32>
    %188 = arith.addf %187, %186 : vector<2x128xf32>
    %189 = arith.divf %187, %188 : vector<2x128xf32>
    %190 = arith.mulf %181, %162 : vector<2x128xf32>
    %191 = arith.mulf %175, %183 : vector<2x128xf32>
    %192 = arith.addf %190, %191 : vector<2x128xf32>
    %193 = math.tanh %192 : vector<2x128xf32>
    %194 = arith.mulf %189, %193 : vector<2x128xf32>
    %195 = vector.broadcast %c4_i32 : i32 to vector<2x1xi32>
    %196 = arith.cmpi slt, %195, %0 : vector<2x1xi32>
    %197 = vector.shape_cast %196 : vector<2x1xi1> to vector<2x1xi1>
    %198 = vector.broadcast %197 : vector<2x1xi1> to vector<2x128xi1>
    %199 = arith.select %198, %194, %159 : vector<2x128xi1>, vector<2x128xf32>
    %200 = vector.shape_cast %196 : vector<2x1xi1> to vector<2x1xi1>
    %201 = vector.broadcast %200 : vector<2x1xi1> to vector<2x128xi1>
    %202 = arith.select %201, %192, %162 : vector<2x128xi1>, vector<2x128xf32>
    %c5_i32 = arith.constant 5 : i32
    %203 = arith.index_cast %c5_i32 : i32 to index
    %c0_42 = arith.constant 0 : index
    %c0_43 = arith.constant 0 : index
    %204 = vector.load %arg0[%203, %c0_42, %c0_43] : memref<6x2x512xf32, #tpu.memory_space<vmem>>, vector<1x2x512xf32>
    %205 = vector.shape_cast %204 : vector<1x2x512xf32> to vector<2x512xf32>
    %206 = arith.truncf %199 : vector<2x128xf32> to vector<2x128xbf16>
    %c0_44 = arith.constant 0 : index
    %c0_45 = arith.constant 0 : index
    %207 = vector.load %arg2[%c0_44, %c0_45] : memref<128x512xbf16, #tpu.memory_space<vmem>>, vector<128x512xbf16>
    %cst_46 = arith.constant dense<0.000000e+00> : vector<2x512xf32>
    %208 = tpu.matmul %206, %207, %cst_46 {dimension_numbers = #tpu.dot_dimension_numbers<[1], [0], [0], [1], [0, 0, 1, 1], [], []>} : vector<2x128xbf16>, vector<128x512xbf16>, vector<2x512xf32> -> vector<2x512xf32>
    %209 = arith.addf %205, %208 : vector<2x512xf32>
    %210 = vector.extract_strided_slice %209 {offsets = [0, 0], sizes = [2, 128], strides = [1, 1]} : vector<2x512xf32> to vector<2x128xf32>
    %211 = arith.negf %210 : vector<2x128xf32>
    %212 = math.exp %211 : vector<2x128xf32>
    %cst_47 = arith.constant 1.000000e+00 : f32
    %213 = vector.broadcast %cst_47 : f32 to vector<2x128xf32>
    %214 = arith.addf %213, %212 : vector<2x128xf32>
    %215 = arith.divf %213, %214 : vector<2x128xf32>
    %216 = vector.extract_strided_slice %209 {offsets = [0, 128], sizes = [2, 128], strides = [1, 1]} : vector<2x512xf32> to vector<2x128xf32>
    %217 = arith.negf %216 : vector<2x128xf32>
    %218 = math.exp %217 : vector<2x128xf32>
    %cst_48 = arith.constant 1.000000e+00 : f32
    %219 = vector.broadcast %cst_48 : f32 to vector<2x128xf32>
    %220 = arith.addf %219, %218 : vector<2x128xf32>
    %221 = arith.divf %219, %220 : vector<2x128xf32>
    %222 = vector.extract_strided_slice %209 {offsets = [0, 256], sizes = [2, 128], strides = [1, 1]} : vector<2x512xf32> to vector<2x128xf32>
    %223 = math.tanh %222 : vector<2x128xf32>
    %224 = vector.extract_strided_slice %209 {offsets = [0, 384], sizes = [2, 128], strides = [1, 1]} : vector<2x512xf32> to vector<2x128xf32>
    %225 = arith.negf %224 : vector<2x128xf32>
    %226 = math.exp %225 : vector<2x128xf32>
    %cst_49 = arith.constant 1.000000e+00 : f32
    %227 = vector.broadcast %cst_49 : f32 to vector<2x128xf32>
    %228 = arith.addf %227, %226 : vector<2x128xf32>
    %229 = arith.divf %227, %228 : vector<2x128xf32>
    %230 = arith.mulf %221, %202 : vector<2x128xf32>
    %231 = arith.mulf %215, %223 : vector<2x128xf32>
    %232 = arith.addf %230, %231 : vector<2x128xf32>
    %233 = math.tanh %232 : vector<2x128xf32>
    %234 = arith.mulf %229, %233 : vector<2x128xf32>
    %235 = vector.broadcast %c5_i32 : i32 to vector<2x1xi32>
    %236 = arith.cmpi slt, %235, %0 : vector<2x1xi32>
    %237 = vector.shape_cast %236 : vector<2x1xi1> to vector<2x1xi1>
    %238 = vector.broadcast %237 : vector<2x1xi1> to vector<2x128xi1>
    %239 = arith.select %238, %234, %199 : vector<2x128xi1>, vector<2x128xf32>
    %240 = vector.shape_cast %236 : vector<2x1xi1> to vector<2x1xi1>
    %241 = vector.broadcast %240 : vector<2x1xi1> to vector<2x128xi1>
    %242 = arith.select %241, %232, %202 : vector<2x128xi1>, vector<2x128xf32>
    %c6_i32 = arith.constant 6 : i32
    %c0_50 = arith.constant 0 : index
    %c0_51 = arith.constant 0 : index
    %243 = vector.load %arg3[%c0_50, %c0_51] : memref<2x128xf32, #tpu.memory_space<vmem>>, vector<2x128xf32>
    tpu.vector_store %arg3[%c0_50, %c0_51], %239 {strides = array<i32>} : memref<2x128xf32, #tpu.memory_space<vmem>>, vector<2x128xf32>,
    %c0_52 = arith.constant 0 : index
    %c0_53 = arith.constant 0 : index
    %244 = vector.load %arg4[%c0_52, %c0_53] : memref<2x128xf32, #tpu.memory_space<vmem>>, vector<2x128xf32>
    tpu.vector_store %arg4[%c0_52, %c0_53], %242 {strides = array<i32>} : memref<2x128xf32, #tpu.memory_space<vmem>>, vector<2x128xf32>,
    return
  }
}

</mosaic_0001>

<llo_original>
// kernel: forward.5
$region0: #{forward.5}
  #allocation0 [shape = 'u32[]', space=smem, size = 0x4, offset = 0x4, fixed_abs, tag = 'smem constant byte address 0x4 - core index']
  #allocation1 [shape = 'u32[144,128]{1,0:T(1,128)}', space=vmem, size = 0x12000, scoped, tag = 'internal scratch']
  %s0 = inlined_call_operand.vmem [shape: bf16[18,100], index: 0, kind: input, shape index: {}]
  %s1 = inlined_call_operand.vmem [shape: bf16[100,64], index: 1, kind: input, shape index: {}]
  %s2 = inlined_call_operand.vmem [shape: f32[1,64], index: 2, kind: input, shape index: {}]
  %s3 = inlined_call_operand.vmem [shape: bf16[18,64], index: 3, kind: output, shape index: {}]
  %s4 = sld [smem:[#allocation0]]
  $region22: #{forward.5} parent=0
    _
  %s6 = ssub.s32 1, %s4
  %s7 = scalar_select 0, %s6, %s4
  // Predicated region
  $region2: #{forward.5} parent=0 // pred_check
    _
  $region3: #{forward.5} parent=0 // pred_check_branch
    %9 = sbr.rel (0) target = $region5
  $region4: #{forward.5} parent=0 // pred_region
    _
  $region5: #{forward.5} parent=0 // pred_fallthru
    _
  // Predicated region
  $region6: #{forward.5} parent=0 // pred_check
    _
  $region7: #{forward.5} parent=0 // pred_check_branch
    %11 = sbr.rel (0) target = $region9
  $region8: #{forward.5} parent=0 // pred_region
    _
  $region9: #{forward.5} parent=0 // pred_fallthru
    _
  // Predicated region
  $region10: #{forward.5} parent=0 // pred_check
    _
  $region11: #{forward.5} parent=0 // pred_check_branch
    %13 = sbr.rel (0) target = $region13
  $region12: #{forward.5} parent=0 // pred_region
    _
  $region13: #{forward.5} parent=0 // pred_fallthru
    _
  %v15 = vld [vmem:[%s0] sm:$0xf]
  %v16 = vld [vmem:[%s0 + $0x4] sm:$0xf]
  %v17 = vld [vmem:[%s0 + $0x8] sm:$0x1]
  %v18 = vld [vmem:[%s1] sm:$0xf]
  %v19 = vld [vmem:[%s1 + $0x4] sm:$0xf]
  %v20 = vld [vmem:[%s1 + $0x8] sm:$0xf]
  %v21 = vld [vmem:[%s1 + $0xc] sm:$0xf]
  %v22 = vld [vmem:[%s1 + $0x10] sm:$0xf]
  %v23 = vld [vmem:[%s1 + $0x14] sm:$0xf]
  %v24 = vld [vmem:[%s1 + $0x18] sm:$0xf]
  %v25 = vld [vmem:[%s1 + $0x1c] sm:$0xf]
  %v26 = vld [vmem:[%s1 + $0x20] sm:$0xf]
  %v27 = vld [vmem:[%s1 + $0x24] sm:$0xf]
  %v28 = vld [vmem:[%s1 + $0x28] sm:$0xf]
  %v29 = vld [vmem:[%s1 + $0x2c] sm:$0xf]
  %v30 = vld [vmem:[%s1 + $0x30] sm:$0x3]
  %v31 = vld [vmem:[%s2] sm:$0x1]
  %v33 = vlaneseq
  %v34 = vshrl.u32 %v33, 7
  %v35 = vsub.s32 0, %v34
  %v36 = vrot.slane %v31, %v35
  %v41 = vunpack.c.l.b16 %v15
  %v42 = vunpack.c.l.b16 %v16
  %v43 = vunpack.c.l.b16 %v17
  %v44 = vpack.c.b16 %v42, %v41
  %v45 = vpack.c.b16 %v43, %v43
  %v59 = vunpack.c.l.b16 %v18
  %v60 = vunpack.c.l.b16 %v19
  %v61 = vunpack.c.l.b16 %v20
  %v62 = vunpack.c.l.b16 %v21
  %v63 = vunpack.c.l.b16 %v22
  %v64 = vunpack.c.l.b16 %v23
  %v65 = vunpack.c.l.b16 %v24
  %v66 = vunpack.c.l.b16 %v25
  %v67 = vunpack.c.l.b16 %v26
  %v68 = vunpack.c.l.b16 %v27
  %v69 = vunpack.c.l.b16 %v28
  %v70 = vunpack.c.l.b16 %v29
  %v71 = vunpack.c.l.b16 %v30
  %v72 = vpack.c.b16 %v60, %v59
  %v73 = vpack.c.b16 %v62, %v61
  %v74 = vpack.c.b16 %v64, %v63
  %v75 = vpack.c.b16 %v66, %v65
  %v76 = vpack.c.b16 %v68, %v67
  %v77 = vpack.c.b16 %v70, %v69
  %v78 = vpack.c.b16 %v71, %v71
  %vm85 = vcmask 818176
  %v87 = vsel %vm85, %v44, 0
  %v90 = vsel %vm85, %v45, 0
  %vm92 = vcmask 1041408
  %v94 = vsel %vm92, %v78, 0
  %96 = vmatprep.subr.bf16.mxu0 0
  %97 = vmatpush1.bf16.msra.mxu0 %v72
  %98 = vmatprep.subr.bf16.mxu0 0
  %99 = vmatpush1.bf16.msra.mxu0 %v73
  %100 = vmatprep.subr.bf16.mxu0 0
  %101 = vmatpush1.bf16.msra.mxu0 %v74
  %102 = vmatprep.subr.bf16.mxu0 0
  %103 = vmatpush1.bf16.msra.mxu0 %v75
  %104 = vmatprep.subr.bf16.mxu0 0
  %105 = vmatpush1.bf16.msra.mxu0 %v76
  %106 = vmatprep.subr.bf16.mxu0 0
  %107 = vmatpush1.bf16.msra.mxu0 %v77
  %108 = vmatprep.subr.bf16.mxu0 0
  %109 = vmatpush1.bf16.msra.mxu0 %v94
  %110 = vmatprep.subr.bf16.mxu0 0
  %111 = vmatpush1.bf16.msra.mxu0 0
  %112 = vmatprep.subr.bf16.mxu0 0
  %113 = vmatpush1.bf16.msra.mxu0 0
  %114 = vmatprep.subr.bf16.mxu0 0
  %115 = vmatpush1.bf16.msra.mxu0 0
  %116 = vmatprep.subr.bf16.mxu0 0
  %117 = vmatpush1.bf16.msra.mxu0 0
  %118 = vmatprep.subr.bf16.mxu0 0
  %119 = vmatpush1.bf16.msra.mxu0 0
  %120 = vmatprep.subr.bf16.mxu0 0
  %121 = vmatpush1.bf16.msra.mxu0 0
  %122 = vmatprep.subr.bf16.mxu0 0
  %123 = vmatpush1.bf16.msra.mxu0 0
  %124 = vmatprep.subr.bf16.mxu0 0
  %125 = vmatpush1.bf16.msra.mxu0 0
  %126 = vmatprep.subr.bf16.mxu0 0
  %127 = vmatpush1.bf16.msra.mxu0 0
  %128 = vmatprep.mubr.bf16.mxu0 0
  %129 = vmatmul.mubr.bf16.gmra.mrb[0].mxu0 %v87
  %v130 = vpop.f32.mrb[0].mxu0
  %v131 = vadd.f32 %v36, %v130
  %v132 = vpop.f32.mrb[0].mxu0
  %v133 = vpop.f32.mrb[0].mxu0
  %v134 = vadd.f32 %v36, %v133
  %v135 = vpop.f32.mrb[0].mxu0
  %136 = vmatprep.mubr.bf16.mxu0 0
  %137 = vmatmul.mubr.bf16.gmra.mrb[0].mxu0 %v90
  %v138 = vpop.f32.mrb[0].mxu0
  %v139 = vadd.f32 %v36, %v138
  %v140 = vpop.f32.mrb[0].mxu0
  %v141 = vpop.f32.mrb[0].mxu0
  %v142 = vpop.f32.mrb[0].mxu0
  %143 = vdwg.mxu0
  %v144 = vmax.f32 %v131, 0.0
  %v145 = vmax.f32 %v134, 0.0
  %v146 = vmax.f32 %v139, 0.0
  %v147 = vpack.c.bf16 %v145, %v144
  %v148 = vpack.c.bf16 %v146, %v146
  %v151 = vunpack.c.l.b16 %v147
  %v152 = vunpack.c.h.b16 %v147
  %v153 = vunpack.c.l.b16 %v148
  %v154 = vpack.c.b16 %v151, %v151
  %v155 = vpack.c.b16 %v152, %v152
  %v156 = vpack.c.b16 %v153, %v153
  %vm160 = vcmask 519168
  %161 = vst.msk [vmem:[%s3] sm:$0xf] %vm160, %v154
  %162 = vst.msk [vmem:[%s3 + $0x4] sm:$0xf] %vm160, %v155
  %vm163 = vcmask 516096
  %164 = vst.msk [vmem:[%s3 + $0x8] sm:$0x1] %vm163, %v156
  // Predicated region
  $region14: #{forward.5} parent=0 // pred_check
    _
  $region15: #{forward.5} parent=0 // pred_check_branch
    %166 = sbr.rel (0) target = $region17
  $region16: #{forward.5} parent=0 // pred_region
    _
  $region17: #{forward.5} parent=0 // pred_fallthru
    _
  // Predicated region
  $region18: #{forward.5} parent=0 // pred_check
    _
  $region19: #{forward.5} parent=0 // pred_check_branch
    %168 = sbr.rel (0) target = $region21
  $region20: #{forward.5} parent=0 // pred_region
    _
  $region21: #{forward.5} parent=0 // pred_fallthru
    _

// kernel: forward.6
$region0: #{forward.6}
  #allocation0 [shape = 'u32[]', space=smem, size = 0x4, offset = 0x4, fixed_abs, tag = 'smem constant byte address 0x4 - core index']
  #allocation1 [shape = 'u32[144,128]{1,0:T(1,128)}', space=vmem, size = 0x12000, scoped, tag = 'internal scratch']
  %s0 = inlined_call_operand.vmem [shape: bf16[2,576], index: 0, kind: input, shape index: {}]
  %s1 = inlined_call_operand.vmem [shape: bf16[576,64], index: 1, kind: input, shape index: {}]
  %s2 = inlined_call_operand.vmem [shape: f32[1,64], index: 2, kind: input, shape index: {}]
  %s3 = inlined_call_operand.vmem [shape: f32[2,64], index: 3, kind: output, shape index: {}]
  %s4 = sld [smem:[#allocation0]]
  $region22: #{forward.6} parent=0
    _
  %s6 = ssub.s32 1, %s4
  %s7 = scalar_select 0, %s6, %s4
  // Predicated region
  $region2: #{forward.6} parent=0 // pred_check
    _
  $region3: #{forward.6} parent=0 // pred_check_branch
    %9 = sbr.rel (0) target = $region5
  $region4: #{forward.6} parent=0 // pred_region
    _
  $region5: #{forward.6} parent=0 // pred_fallthru
    _
  // Predicated region
  $region6: #{forward.6} parent=0 // pred_check
    _
  $region7: #{forward.6} parent=0 // pred_check_branch
    %11 = sbr.rel (0) target = $region9
  $region8: #{forward.6} parent=0 // pred_region
    _
  $region9: #{forward.6} parent=0 // pred_fallthru
    _
  // Predicated region
  $region10: #{forward.6} parent=0 // pred_check
    _
  $region11: #{forward.6} parent=0 // pred_check_branch
    %13 = sbr.rel (0) target = $region13
  $region12: #{forward.6} parent=0 // pred_region
    _
  $region13: #{forward.6} parent=0 // pred_fallthru
    _
  %v15 = vld [vmem:[%s0] sm:$0x1f]
  %v16 = vld [vmem:[%s1] sm:$0xf]
  %v17 = vld [vmem:[%s1 + $0x4] sm:$0xf]
  %v18 = vld [vmem:[%s1 + $0x8] sm:$0xf]
  %v19 = vld [vmem:[%s1 + $0xc] sm:$0xf]
  %v20 = vld [vmem:[%s1 + $0x10] sm:$0xf]
  %v21 = vld [vmem:[%s1 + $0x14] sm:$0xf]
  %v22 = vld [vmem:[%s1 + $0x18] sm:$0xf]
  %v23 = vld [vmem:[%s1 + $0x1c] sm:$0xf]
  %v24 = vld [vmem:[%s1 + $0x20] sm:$0xf]
  %v25 = vld [vmem:[%s1 + $0x24] sm:$0xf]
  %v26 = vld [vmem:[%s1 + $0x28] sm:$0xf]
  %v27 = vld [vmem:[%s1 + $0x2c] sm:$0xf]
  %v28 = vld [vmem:[%s1 + $0x30] sm:$0xf]
  %v29 = vld [vmem:[%s1 + $0x34] sm:$0xf]
  %v30 = vld [vmem:[%s1 + $0x38] sm:$0xf]
  %v31 = vld [vmem:[%s1 + $0x3c] sm:$0xf]
  %v32 = vld [vmem:[%s1 + $0x40] sm:$0xf]
  %v33 = vld [vmem:[%s1 + $0x44] sm:$0xf]
  %v34 = vld [vmem:[%s1 + $0x48] sm:$0xf]
  %v35 = vld [vmem:[%s1 + $0x4c] sm:$0xf]
  %v36 = vld [vmem:[%s1 + $0x50] sm:$0xf]
  %v37 = vld [vmem:[%s1 + $0x54] sm:$0xf]
  %v38 = vld [vmem:[%s1 + $0x58] sm:$0xf]
  %v39 = vld [vmem:[%s1 + $0x5c] sm:$0xf]
  %v40 = vld [vmem:[%s1 + $0x60] sm:$0xf]
  %v41 = vld [vmem:[%s1 + $0x64] sm:$0xf]
  %v42 = vld [vmem:[%s1 + $0x68] sm:$0xf]
  %v43 = vld [vmem:[%s1 + $0x6c] sm:$0xf]
  %v44 = vld [vmem:[%s1 + $0x70] sm:$0xf]
  %v45 = vld [vmem:[%s1 + $0x74] sm:$0xf]
  %v46 = vld [vmem:[%s1 + $0x78] sm:$0xf]
  %v47 = vld [vmem:[%s1 + $0x7c] sm:$0xf]
  %v48 = vld [vmem:[%s1 + $0x80] sm:$0xf]
  %v49 = vld [vmem:[%s1 + $0x84] sm:$0xf]
  %v50 = vld [vmem:[%s1 + $0x88] sm:$0xf]
  %v51 = vld [vmem:[%s1 + $0x8c] sm:$0xf]
  %v52 = vld [vmem:[%s1 + $0x90] sm:$0xf]
  %v53 = vld [vmem:[%s1 + $0x94] sm:$0xf]
  %v54 = vld [vmem:[%s1 + $0x98] sm:$0xf]
  %v55 = vld [vmem:[%s1 + $0x9c] sm:$0xf]
  %v56 = vld [vmem:[%s1 + $0xa0] sm:$0xf]
  %v57 = vld [vmem:[%s1 + $0xa4] sm:$0xf]
  %v58 = vld [vmem:[%s1 + $0xa8] sm:$0xf]
  %v59 = vld [vmem:[%s1 + $0xac] sm:$0xf]
  %v60 = vld [vmem:[%s1 + $0xb0] sm:$0xf]
  %v61 = vld [vmem:[%s1 + $0xb4] sm:$0xf]
  %v62 = vld [vmem:[%s1 + $0xb8] sm:$0xf]
  %v63 = vld [vmem:[%s1 + $0xbc] sm:$0xf]
  %v64 = vld [vmem:[%s1 + $0xc0] sm:$0xf]
  %v65 = vld [vmem:[%s1 + $0xc4] sm:$0xf]
  %v66 = vld [vmem:[%s1 + $0xc8] sm:$0xf]
  %v67 = vld [vmem:[%s1 + $0xcc] sm:$0xf]
  %v68 = vld [vmem:[%s1 + $0xd0] sm:$0xf]
  %v69 = vld [vmem:[%s1 + $0xd4] sm:$0xf]
  %v70 = vld [vmem:[%s1 + $0xd8] sm:$0xf]
  %v71 = vld [vmem:[%s1 + $0xdc] sm:$0xf]
  %v72 = vld [vmem:[%s1 + $0xe0] sm:$0xf]
  %v73 = vld [vmem:[%s1 + $0xe4] sm:$0xf]
  %v74 = vld [vmem:[%s1 + $0xe8] sm:$0xf]
  %v75 = vld [vmem:[%s1 + $0xec] sm:$0xf]
  %v76 = vld [vmem:[%s1 + $0xf0] sm:$0xf]
  %v77 = vld [vmem:[%s1 + $0xf4] sm:$0xf]
  %v78 = vld [vmem:[%s1 + $0xf8] sm:$0xf]
  %v79 = vld [vmem:[%s1 + $0xfc] sm:$0xf]
  %v80 = vld [vmem:[%s1 + $0x100] sm:$0xf]
  %v81 = vld [vmem:[%s1 + $0x104] sm:$0xf]
  %v82 = vld [vmem:[%s1 + $0x108] sm:$0xf]
  %v83 = vld [vmem:[%s1 + $0x10c] sm:$0xf]
  %v84 = vld [vmem:[%s1 + $0x110] sm:$0xf]
  %v85 = vld [vmem:[%s1 + $0x114] sm:$0xf]
  %v86 = vld [vmem:[%s1 + $0x118] sm:$0xf]
  %v87 = vld [vmem:[%s1 + $0x11c] sm:$0xf]
  %v88 = vld [vmem:[%s2] sm:$0x1]
  %v90 = vlaneseq
  %v91 = vshrl.u32 %v90, 7
  %v92 = vsub.s32 0, %v91
  %v93 = vrot.slane %v88, %v92
  %v96 = vcombine.high %v15, %v15
  %v98 = vunpack.c.l.s4 1966171168
  %v99 = vunpack.c.0.s8 %v98
  %v100 = vlaneseq
  %v101 = vshrl.u32 %v100, 7
  %v102 = vsub.s32 %v99, %v101
  %v103 = vrot.slane %v15, %v102
  %v105 = vunpack.c.l.s4 1966171168
  %v106 = vunpack.c.0.s8 %v105
  %v107 = vlaneseq
  %v108 = vshrl.u32 %v107, 7
  %v109 = vsub.s32 %v106, %v108
  %v110 = vrot.slane %v96, %v109
  %v111 = vcombine.high %v103, %v103
  %v113 = vunpack.c.l.s4 1966171168
  %v114 = vunpack.c.0.s8 %v113
  %v115 = vlaneseq
  %v116 = vshrl.u32 %v115, 7
  %v117 = vsub.s32 %v114, %v116
  %v118 = vrot.slane %v103, %v117
  %v120 = vunpack.c.l.s4 1966171168
  %v121 = vunpack.c.0.s8 %v120
  %v122 = vlaneseq
  %v123 = vshrl.u32 %v122, 7
  %v124 = vsub.s32 %v121, %v123
  %v125 = vrot.slane %v110, %v124
  %v127 = vunpack.c.l.s4 1966171168
  %v128 = vunpack.c.0.s8 %v127
  %v129 = vlaneseq
  %v130 = vshrl.u32 %v129, 7
  %v131 = vsub.s32 %v128, %v130
  %v132 = vrot.slane %v111, %v131
  %v133 = vcombine.high %v118, %v118
  %v134 = vcombine.high %v132, %v132
  %v211 = vunpack.c.l.b16 %v16
  %v212 = vunpack.c.l.b16 %v17
  %v213 = vunpack.c.l.b16 %v18
  %v214 = vunpack.c.l.b16 %v19
  %v215 = vunpack.c.l.b16 %v20
  %v216 = vunpack.c.l.b16 %v21
  %v217 = vunpack.c.l.b16 %v22
  %v218 = vunpack.c.l.b16 %v23
  %v219 = vunpack.c.l.b16 %v24
  %v220 = vunpack.c.l.b16 %v25
  %v221 = vunpack.c.l.b16 %v26
  %v222 = vunpack.c.l.b16 %v27
  %v223 = vunpack.c.l.b16 %v28
  %v224 = vunpack.c.l.b16 %v29
  %v225 = vunpack.c.l.b16 %v30
  %v226 = vunpack.c.l.b16 %v31
  %v227 = vunpack.c.l.b16 %v32
  %v228 = vunpack.c.l.b16 %v33
  %v229 = vunpack.c.l.b16 %v34
  %v230 = vunpack.c.l.b16 %v35
  %v231 = vunpack.c.l.b16 %v36
  %v232 = vunpack.c.l.b16 %v37
  %v233 = vunpack.c.l.b16 %v38
  %v234 = vunpack.c.l.b16 %v39
  %v235 = vunpack.c.l.b16 %v40
  %v236 = vunpack.c.l.b16 %v41
  %v237 = vunpack.c.l.b16 %v42
  %v238 = vunpack.c.l.b16 %v43
  %v239 = vunpack.c.l.b16 %v44
  %v240 = vunpack.c.l.b16 %v45
  %v241 = vunpack.c.l.b16 %v46
  %v242 = vunpack.c.l.b16 %v47
  %v243 = vunpack.c.l.b16 %v48
  %v244 = vunpack.c.l.b16 %v49
  %v245 = vunpack.c.l.b16 %v50
  %v246 = vunpack.c.l.b16 %v51
  %v247 = vunpack.c.l.b16 %v52
  %v248 = vunpack.c.l.b16 %v53
  %v249 = vunpack.c.l.b16 %v54
  %v250 = vunpack.c.l.b16 %v55
  %v251 = vunpack.c.l.b16 %v56
  %v252 = vunpack.c.l.b16 %v57
  %v253 = vunpack.c.l.b16 %v58
  %v254 = vunpack.c.l.b16 %v59
  %v255 = vunpack.c.l.b16 %v60
  %v256 = vunpack.c.l.b16 %v61
  %v257 = vunpack.c.l.b16 %v62
  %v258 = vunpack.c.l.b16 %v63
  %v259 = vunpack.c.l.b16 %v64
  %v260 = vunpack.c.l.b16 %v65
  %v261 = vunpack.c.l.b16 %v66
  %v262 = vunpack.c.l.b16 %v67
  %v263 = vunpack.c.l.b16 %v68
  %v264 = vunpack.c.l.b16 %v69
  %v265 = vunpack.c.l.b16 %v70
  %v266 = vunpack.c.l.b16 %v71
  %v267 = vunpack.c.l.b16 %v72
  %v268 = vunpack.c.l.b16 %v73
  %v269 = vunpack.c.l.b16 %v74
  %v270 = vunpack.c.l.b16 %v75
  %v271 = vunpack.c.l.b16 %v76
  %v272 = vunpack.c.l.b16 %v77
  %v273 = vunpack.c.l.b16 %v78
  %v274 = vunpack.c.l.b16 %v79
  %v275 = vunpack.c.l.b16 %v80
  %v276 = vunpack.c.l.b16 %v81
  %v277 = vunpack.c.l.b16 %v82
  %v278 = vunpack.c.l.b16 %v83
  %v279 = vunpack.c.l.b16 %v84
  %v280 = vunpack.c.l.b16 %v85
  %v281 = vunpack.c.l.b16 %v86
  %v282 = vunpack.c.l.b16 %v87
  %v283 = vpack.c.b16 %v212, %v211
  %v284 = vpack.c.b16 %v214, %v213
  %v285 = vpack.c.b16 %v216, %v215
  %v286 = vpack.c.b16 %v218, %v217
  %v287 = vpack.c.b16 %v220, %v219
  %v288 = vpack.c.b16 %v222, %v221
  %v289 = vpack.c.b16 %v224, %v223
  %v290 = vpack.c.b16 %v226, %v225
  %v291 = vpack.c.b16 %v228, %v227
  %v292 = vpack.c.b16 %v230, %v229
  %v293 = vpack.c.b16 %v232, %v231
  %v294 = vpack.c.b16 %v234, %v233
  %v295 = vpack.c.b16 %v236, %v235
  %v296 = vpack.c.b16 %v238, %v237
  %v297 = vpack.c.b16 %v240, %v239
  %v298 = vpack.c.b16 %v242, %v241
  %v299 = vpack.c.b16 %v244, %v243
  %v300 = vpack.c.b16 %v246, %v245
  %v301 = vpack.c.b16 %v248, %v247
  %v302 = vpack.c.b16 %v250, %v249
  %v303 = vpack.c.b16 %v252, %v251
  %v304 = vpack.c.b16 %v254, %v253
  %v305 = vpack.c.b16 %v256, %v255
  %v306 = vpack.c.b16 %v258, %v257
  %v307 = vpack.c.b16 %v260, %v259
  %v308 = vpack.c.b16 %v262, %v261
  %v309 = vpack.c.b16 %v264, %v263
  %v310 = vpack.c.b16 %v266, %v265
  %v311 = vpack.c.b16 %v268, %v267
  %v312 = vpack.c.b16 %v270, %v269
  %v313 = vpack.c.b16 %v272, %v271
  %v314 = vpack.c.b16 %v274, %v273
  %v315 = vpack.c.b16 %v276, %v275
  %v316 = vpack.c.b16 %v278, %v277
  %v317 = vpack.c.b16 %v280, %v279
  %v318 = vpack.c.b16 %v282, %v281
  %vm355 = vcmask 523264
  %v357 = vsel %vm355, %v125, 0
  %359 = vmatprep.subr.bf16.mxu0 0
  %360 = vmatpush1.bf16.msra.mxu0 %v283
  %361 = vmatprep.subr.bf16.mxu0 0
  %362 = vmatpush1.bf16.msra.mxu0 %v284
  %363 = vmatprep.subr.bf16.mxu0 0
  %364 = vmatpush1.bf16.msra.mxu0 %v285
  %365 = vmatprep.subr.bf16.mxu0 0
  %366 = vmatpush1.bf16.msra.mxu0 %v286
  %367 = vmatprep.subr.bf16.mxu0 0
  %368 = vmatpush1.bf16.msra.mxu0 %v287
  %369 = vmatprep.subr.bf16.mxu0 0
  %370 = vmatpush1.bf16.msra.mxu0 %v288
  %371 = vmatprep.subr.bf16.mxu0 0
  %372 = vmatpush1.bf16.msra.mxu0 %v289
  %373 = vmatprep.subr.bf16.mxu0 0
  %374 = vmatpush1.bf16.msra.mxu0 %v290
  %375 = vmatprep.subr.bf16.mxu0 0
  %376 = vmatpush1.bf16.msra.mxu0 %v291
  %377 = vmatprep.subr.bf16.mxu0 0
  %378 = vmatpush1.bf16.msra.mxu0 %v292
  %379 = vmatprep.subr.bf16.mxu0 0
  %380 = vmatpush1.bf16.msra.mxu0 %v293
  %381 = vmatprep.subr.bf16.mxu0 0
  %382 = vmatpush1.bf16.msra.mxu0 %v294
  %383 = vmatprep.subr.bf16.mxu0 0
  %384 = vmatpush1.bf16.msra.mxu0 %v295
  %385 = vmatprep.subr.bf16.mxu0 0
  %386 = vmatpush1.bf16.msra.mxu0 %v296
  %387 = vmatprep.subr.bf16.mxu0 0
  %388 = vmatpush1.bf16.msra.mxu0 %v297
  %389 = vmatprep.subr.bf16.mxu0 0
  %390 = vmatpush1.bf16.msra.mxu0 %v298
  %391 = vmatprep.mubr.bf16.mxu0 %v132
  %392 = vmatmul.mubr.bf16.gmra.mrb[0].mxu0 %v118
  %v393 = vpop.f32.mrb[0].mxu0
  %v394 = vadd.f32 %v93, %v393
  %v395 = vpop.f32.mrb[0].mxu0
  %v396 = vpop.f32.mrb[0].mxu0
  %v397 = vpop.f32.mrb[0].mxu0
  %398 = vdwg.mxu0
  %399 = vmatprep.subr.bf16.mxu0 0
  %400 = vmatpush1.bf16.msra.mxu0 %v299
  %401 = vmatprep.subr.bf16.mxu0 0
  %402 = vmatpush1.bf16.msra.mxu0 %v300
  %403 = vmatprep.subr.bf16.mxu0 0
  %404 = vmatpush1.bf16.msra.mxu0 %v301
  %405 = vmatprep.subr.bf16.mxu0 0
  %406 = vmatpush1.bf16.msra.mxu0 %v302
  %407 = vmatprep.subr.bf16.mxu0 0
  %408 = vmatpush1.bf16.msra.mxu0 %v303
  %409 = vmatprep.subr.bf16.mxu0 0
  %410 = vmatpush1.bf16.msra.mxu0 %v304
  %411 = vmatprep.subr.bf16.mxu0 0
  %412 = vmatpush1.bf16.msra.mxu0 %v305
  %413 = vmatprep.subr.bf16.mxu0 0
  %414 = vmatpush1.bf16.msra.mxu0 %v306
  %415 = vmatprep.subr.bf16.mxu0 0
  %416 = vmatpush1.bf16.msra.mxu0 %v307
  %417 = vmatprep.subr.bf16.mxu0 0
  %418 = vmatpush1.bf16.msra.mxu0 %v308
  %419 = vmatprep.subr.bf16.mxu0 0
  %420 = vmatpush1.bf16.msra.mxu0 %v309
  %421 = vmatprep.subr.bf16.mxu0 0
  %422 = vmatpush1.bf16.msra.mxu0 %v310
  %423 = vmatprep.subr.bf16.mxu0 0
  %424 = vmatpush1.bf16.msra.mxu0 %v311
  %425 = vmatprep.subr.bf16.mxu0 0
  %426 = vmatpush1.bf16.msra.mxu0 %v312
  %427 = vmatprep.subr.bf16.mxu0 0
  %428 = vmatpush1.bf16.msra.mxu0 %v313
  %429 = vmatprep.subr.bf16.mxu0 0
  %430 = vmatpush1.bf16.msra.mxu0 %v314
  %431 = vmatprep.mubr.bf16.mxu0 %v134
  %432 = vmatmul.mubr.bf16.gmra.mrb[0].mxu0 %v133
  %v433 = vpop.f32.mrb[0].mxu0
  %v434 = vadd.f32 %v394, %v433
  %v435 = vpop.f32.mrb[0].mxu0
  %v436 = vpop.f32.mrb[0].mxu0
  %v437 = vpop.f32.mrb[0].mxu0
  %438 = vdwg.mxu0
  %439 = vmatprep.subr.bf16.mxu0 0
  %440 = vmatpush1.bf16.msra.mxu0 %v315
  %441 = vmatprep.subr.bf16.mxu0 0
  %442 = vmatpush1.bf16.msra.mxu0 %v316
  %443 = vmatprep.subr.bf16.mxu0 0
  %444 = vmatpush1.bf16.msra.mxu0 %v317
  %445 = vmatprep.subr.bf16.mxu0 0
  %446 = vmatpush1.bf16.msra.mxu0 %v318
  %447 = vmatprep.subr.bf16.mxu0 0
  %448 = vmatpush1.bf16.msra.mxu0 0
  %449 = vmatprep.subr.bf16.mxu0 0
  %450 = vmatpush1.bf16.msra.mxu0 0
  %451 = vmatprep.subr.bf16.mxu0 0
  %452 = vmatpush1.bf16.msra.mxu0 0
  %453 = vmatprep.subr.bf16.mxu0 0
  %454 = vmatpush1.bf16.msra.mxu0 0
  %455 = vmatprep.subr.bf16.mxu0 0
  %456 = vmatpush1.bf16.msra.mxu0 0
  %457 = vmatprep.subr.bf16.mxu0 0
  %458 = vmatpush1.bf16.msra.mxu0 0
  %459 = vmatprep.subr.bf16.mxu0 0
  %460 = vmatpush1.bf16.msra.mxu0 0
  %461 = vmatprep.subr.bf16.mxu0 0
  %462 = vmatpush1.bf16.msra.mxu0 0
  %463 = vmatprep.subr.bf16.mxu0 0
  %464 = vmatpush1.bf16.msra.mxu0 0
  %465 = vmatprep.subr.bf16.mxu0 0
  %466 = vmatpush1.bf16.msra.mxu0 0
  %467 = vmatprep.subr.bf16.mxu0 0
  %468 = vmatpush1.bf16.msra.mxu0 0
  %469 = vmatprep.subr.bf16.mxu0 0
  %470 = vmatpush1.bf16.msra.mxu0 0
  %471 = vmatprep.mubr.bf16.mxu0 0
  %472 = vmatmul.mubr.bf16.gmra.mrb[0].mxu0 %v357
  %v473 = vpop.f32.mrb[0].mxu0
  %v474 = vadd.f32 %v434, %v473
  %v475 = vpop.f32.mrb[0].mxu0
  %v476 = vpop.f32.mrb[0].mxu0
  %v477 = vpop.f32.mrb[0].mxu0
  %478 = vdwg.mxu0
  %v479 = vmax.f32 %v474, 0.0
  %vm480 = vcmask 517120
  %481 = vst.msk [vmem:[%s3] sm:$0x3] %vm480, %v479
  // Predicated region
  $region14: #{forward.6} parent=0 // pred_check
    _
  $region15: #{forward.6} parent=0 // pred_check_branch
    %483 = sbr.rel (0) target = $region17
  $region16: #{forward.6} parent=0 // pred_region
    _
  $region17: #{forward.6} parent=0 // pred_fallthru
    _
  // Predicated region
  $region18: #{forward.6} parent=0 // pred_check
    _
  $region19: #{forward.6} parent=0 // pred_check_branch
    %485 = sbr.rel (0) target = $region21
  $region20: #{forward.6} parent=0 // pred_region
    _
  $region21: #{forward.6} parent=0 // pred_fallthru
    _

// kernel: forward.9
$region0: #{forward.9}
  #allocation0 [shape = 'u32[]', space=smem, size = 0x4, offset = 0x4, fixed_abs, tag = 'smem constant byte address 0x4 - core index']
  #allocation1 [shape = 'u32[144,128]{1,0:T(1,128)}', space=vmem, size = 0x12000, scoped, tag = 'internal scratch']
  %s0 = inlined_call_operand.vmem [shape: bf16[2,320], index: 0, kind: input, shape index: {}]
  %s1 = inlined_call_operand.vmem [shape: bf16[320,128], index: 1, kind: input, shape index: {}]
  %s2 = inlined_call_operand.vmem [shape: f32[1,128], index: 2, kind: input, shape index: {}]
  %s3 = inlined_call_operand.vmem [shape: f32[2,128], index: 3, kind: output, shape index: {}]
  %s4 = sld [smem:[#allocation0]]
  $region22: #{forward.9} parent=0
    _
  %s6 = ssub.s32 1, %s4
  %s7 = scalar_select 0, %s6, %s4
  // Predicated region
  $region2: #{forward.9} parent=0 // pred_check
    _
  $region3: #{forward.9} parent=0 // pred_check_branch
    %9 = sbr.rel (0) target = $region5
  $region4: #{forward.9} parent=0 // pred_region
    _
  $region5: #{forward.9} parent=0 // pred_fallthru
    _
  // Predicated region
  $region6: #{forward.9} parent=0 // pred_check
    _
  $region7: #{forward.9} parent=0 // pred_check_branch
    %11 = sbr.rel (0) target = $region9
  $region8: #{forward.9} parent=0 // pred_region
    _
  $region9: #{forward.9} parent=0 // pred_fallthru
    _
  // Predicated region
  $region10: #{forward.9} parent=0 // pred_check
    _
  $region11: #{forward.9} parent=0 // pred_check_branch
    %13 = sbr.rel (0) target = $region13
  $region12: #{forward.9} parent=0 // pred_region
    _
  $region13: #{forward.9} parent=0 // pred_fallthru
    _
  %v15 = vld [vmem:[%s0] sm:$0x7]
  %v16 = vld [vmem:[%s1] sm:$0xf]
  %v17 = vld [vmem:[%s1 + $0x4] sm:$0xf]
  %v18 = vld [vmem:[%s1 + $0x8] sm:$0xf]
  %v19 = vld [vmem:[%s1 + $0xc] sm:$0xf]
  %v20 = vld [vmem:[%s1 + $0x10] sm:$0xf]
  %v21 = vld [vmem:[%s1 + $0x14] sm:$0xf]
  %v22 = vld [vmem:[%s1 + $0x18] sm:$0xf]
  %v23 = vld [vmem:[%s1 + $0x1c] sm:$0xf]
  %v24 = vld [vmem:[%s1 + $0x20] sm:$0xf]
  %v25 = vld [vmem:[%s1 + $0x24] sm:$0xf]
  %v26 = vld [vmem:[%s1 + $0x28] sm:$0xf]
  %v27 = vld [vmem:[%s1 + $0x2c] sm:$0xf]
  %v28 = vld [vmem:[%s1 + $0x30] sm:$0xf]
  %v29 = vld [vmem:[%s1 + $0x34] sm:$0xf]
  %v30 = vld [vmem:[%s1 + $0x38] sm:$0xf]
  %v31 = vld [vmem:[%s1 + $0x3c] sm:$0xf]
  %v32 = vld [vmem:[%s1 + $0x40] sm:$0xf]
  %v33 = vld [vmem:[%s1 + $0x44] sm:$0xf]
  %v34 = vld [vmem:[%s1 + $0x48] sm:$0xf]
  %v35 = vld [vmem:[%s1 + $0x4c] sm:$0xf]
  %v36 = vld [vmem:[%s1 + $0x50] sm:$0xf]
  %v37 = vld [vmem:[%s1 + $0x54] sm:$0xf]
  %v38 = vld [vmem:[%s1 + $0x58] sm:$0xf]
  %v39 = vld [vmem:[%s1 + $0x5c] sm:$0xf]
  %v40 = vld [vmem:[%s1 + $0x60] sm:$0xf]
  %v41 = vld [vmem:[%s1 + $0x64] sm:$0xf]
  %v42 = vld [vmem:[%s1 + $0x68] sm:$0xf]
  %v43 = vld [vmem:[%s1 + $0x6c] sm:$0xf]
  %v44 = vld [vmem:[%s1 + $0x70] sm:$0xf]
  %v45 = vld [vmem:[%s1 + $0x74] sm:$0xf]
  %v46 = vld [vmem:[%s1 + $0x78] sm:$0xf]
  %v47 = vld [vmem:[%s1 + $0x7c] sm:$0xf]
  %v48 = vld [vmem:[%s1 + $0x80] sm:$0xf]
  %v49 = vld [vmem:[%s1 + $0x84] sm:$0xf]
  %v50 = vld [vmem:[%s1 + $0x88] sm:$0xf]
  %v51 = vld [vmem:[%s1 + $0x8c] sm:$0xf]
  %v52 = vld [vmem:[%s1 + $0x90] sm:$0xf]
  %v53 = vld [vmem:[%s1 + $0x94] sm:$0xf]
  %v54 = vld [vmem:[%s1 + $0x98] sm:$0xf]
  %v55 = vld [vmem:[%s1 + $0x9c] sm:$0xf]
  %v56 = vld [vmem:[%s2] sm:$0x1]
  %v58 = vlaneseq
  %v59 = vshrl.u32 %v58, 7
  %v60 = vsub.s32 0, %v59
  %v61 = vrot.slane %v56, %v60
  %v65 = vunpack.c.l.s4 1966171168
  %v66 = vunpack.c.0.s8 %v65
  %v67 = vlaneseq
  %v68 = vshrl.u32 %v67, 7
  %v69 = vsub.s32 %v66, %v68
  %v70 = vrot.slane %v15, %v69
  %v71 = vcombine.high %v70, %v70
  %v73 = vunpack.c.l.s4 1966171168
  %v74 = vunpack.c.0.s8 %v73
  %v75 = vlaneseq
  %v76 = vshrl.u32 %v75, 7
  %v77 = vsub.s32 %v74, %v76
  %v78 = vrot.slane %v70, %v77
  %v80 = vunpack.c.l.s4 1966171168
  %v81 = vunpack.c.0.s8 %v80
  %v82 = vlaneseq
  %v83 = vshrl.u32 %v82, 7
  %v84 = vsub.s32 %v81, %v83
  %v85 = vrot.slane %v71, %v84
  %v86 = vcombine.high %v78, %v78
  %v129 = vunpack.c.l.b16 %v16
  %v130 = vunpack.c.l.b16 %v17
  %v131 = vunpack.c.l.b16 %v18
  %v132 = vunpack.c.l.b16 %v19
  %v133 = vunpack.c.l.b16 %v20
  %v134 = vunpack.c.l.b16 %v21
  %v135 = vunpack.c.l.b16 %v22
  %v136 = vunpack.c.l.b16 %v23
  %v137 = vunpack.c.l.b16 %v24
  %v138 = vunpack.c.l.b16 %v25
  %v139 = vunpack.c.l.b16 %v26
  %v140 = vunpack.c.l.b16 %v27
  %v141 = vunpack.c.l.b16 %v28
  %v142 = vunpack.c.l.b16 %v29
  %v143 = vunpack.c.l.b16 %v30
  %v144 = vunpack.c.l.b16 %v31
  %v145 = vunpack.c.l.b16 %v32
  %v146 = vunpack.c.l.b16 %v33
  %v147 = vunpack.c.l.b16 %v34
  %v148 = vunpack.c.l.b16 %v35
  %v149 = vunpack.c.l.b16 %v36
  %v150 = vunpack.c.l.b16 %v37
  %v151 = vunpack.c.l.b16 %v38
  %v152 = vunpack.c.l.b16 %v39
  %v153 = vunpack.c.l.b16 %v40
  %v154 = vunpack.c.l.b16 %v41
  %v155 = vunpack.c.l.b16 %v42
  %v156 = vunpack.c.l.b16 %v43
  %v157 = vunpack.c.l.b16 %v44
  %v158 = vunpack.c.l.b16 %v45
  %v159 = vunpack.c.l.b16 %v46
  %v160 = vunpack.c.l.b16 %v47
  %v161 = vunpack.c.l.b16 %v48
  %v162 = vunpack.c.l.b16 %v49
  %v163 = vunpack.c.l.b16 %v50
  %v164 = vunpack.c.l.b16 %v51
  %v165 = vunpack.c.l.b16 %v52
  %v166 = vunpack.c.l.b16 %v53
  %v167 = vunpack.c.l.b16 %v54
  %v168 = vunpack.c.l.b16 %v55
  %v169 = vpack.c.b16 %v130, %v129
  %v170 = vpack.c.b16 %v132, %v131
  %v171 = vpack.c.b16 %v134, %v133
  %v172 = vpack.c.b16 %v136, %v135
  %v173 = vpack.c.b16 %v138, %v137
  %v174 = vpack.c.b16 %v140, %v139
  %v175 = vpack.c.b16 %v142, %v141
  %v176 = vpack.c.b16 %v144, %v143
  %v177 = vpack.c.b16 %v146, %v145
  %v178 = vpack.c.b16 %v148, %v147
  %v179 = vpack.c.b16 %v150, %v149
  %v180 = vpack.c.b16 %v152, %v151
  %v181 = vpack.c.b16 %v154, %v153
  %v182 = vpack.c.b16 %v156, %v155
  %v183 = vpack.c.b16 %v158, %v157
  %v184 = vpack.c.b16 %v160, %v159
  %v185 = vpack.c.b16 %v162, %v161
  %v186 = vpack.c.b16 %v164, %v163
  %v187 = vpack.c.b16 %v166, %v165
  %v188 = vpack.c.b16 %v168, %v167
  %vm209 = vcmask 523264
  %v211 = vsel %vm209, %v86, 0
  %213 = vmatprep.subr.bf16.mxu0 0
  %214 = vmatpush1.bf16.msra.mxu0 %v169
  %215 = vmatprep.subr.bf16.mxu0 0
  %216 = vmatpush1.bf16.msra.mxu0 %v170
  %217 = vmatprep.subr.bf16.mxu0 0
  %218 = vmatpush1.bf16.msra.mxu0 %v171
  %219 = vmatprep.subr.bf16.mxu0 0
  %220 = vmatpush1.bf16.msra.mxu0 %v172
  %221 = vmatprep.subr.bf16.mxu0 0
  %222 = vmatpush1.bf16.msra.mxu0 %v173
  %223 = vmatprep.subr.bf16.mxu0 0
  %224 = vmatpush1.bf16.msra.mxu0 %v174
  %225 = vmatprep.subr.bf16.mxu0 0
  %226 = vmatpush1.bf16.msra.mxu0 %v175
  %227 = vmatprep.subr.bf16.mxu0 0
  %228 = vmatpush1.bf16.msra.mxu0 %v176
  %229 = vmatprep.subr.bf16.mxu0 0
  %230 = vmatpush1.bf16.msra.mxu0 %v177
  %231 = vmatprep.subr.bf16.mxu0 0
  %232 = vmatpush1.bf16.msra.mxu0 %v178
  %233 = vmatprep.subr.bf16.mxu0 0
  %234 = vmatpush1.bf16.msra.mxu0 %v179
  %235 = vmatprep.subr.bf16.mxu0 0
  %236 = vmatpush1.bf16.msra.mxu0 %v180
  %237 = vmatprep.subr.bf16.mxu0 0
  %238 = vmatpush1.bf16.msra.mxu0 %v181
  %239 = vmatprep.subr.bf16.mxu0 0
  %240 = vmatpush1.bf16.msra.mxu0 %v182
  %241 = vmatprep.subr.bf16.mxu0 0
  %242 = vmatpush1.bf16.msra.mxu0 %v183
  %243 = vmatprep.subr.bf16.mxu0 0
  %244 = vmatpush1.bf16.msra.mxu0 %v184
  %245 = vmatprep.mubr.bf16.mxu0 %v85
  %246 = vmatmul.mubr.bf16.gmra.mrb[0].mxu0 %v78
  %v247 = vpop.f32.mrb[0].mxu0
  %v248 = vadd.f32 %v61, %v247
  %v249 = vpop.f32.mrb[0].mxu0
  %v250 = vpop.f32.mrb[0].mxu0
  %v251 = vpop.f32.mrb[0].mxu0
  %252 = vdwg.mxu0
  %253 = vmatprep.subr.bf16.mxu0 0
  %254 = vmatpush1.bf16.msra.mxu0 %v185
  %255 = vmatprep.subr.bf16.mxu0 0
  %256 = vmatpush1.bf16.msra.mxu0 %v186
  %257 = vmatprep.subr.bf16.mxu0 0
  %258 = vmatpush1.bf16.msra.mxu0 %v187
  %259 = vmatprep.subr.bf16.mxu0 0
  %260 = vmatpush1.bf16.msra.mxu0 %v188
  %261 = vmatprep.subr.bf16.mxu0 0
  %262 = vmatpush1.bf16.msra.mxu0 0
  %263 = vmatprep.subr.bf16.mxu0 0
  %264 = vmatpush1.bf16.msra.mxu0 0
  %265 = vmatprep.subr.bf16.mxu0 0
  %266 = vmatpush1.bf16.msra.mxu0 0
  %267 = vmatprep.subr.bf16.mxu0 0
  %268 = vmatpush1.bf16.msra.mxu0 0
  %269 = vmatprep.subr.bf16.mxu0 0
  %270 = vmatpush1.bf16.msra.mxu0 0
  %271 = vmatprep.subr.bf16.mxu0 0
  %272 = vmatpush1.bf16.msra.mxu0 0
  %273 = vmatprep.subr.bf16.mxu0 0
  %274 = vmatpush1.bf16.msra.mxu0 0
  %275 = vmatprep.subr.bf16.mxu0 0
  %276 = vmatpush1.bf16.msra.mxu0 0
  %277 = vmatprep.subr.bf16.mxu0 0
  %278 = vmatpush1.bf16.msra.mxu0 0
  %279 = vmatprep.subr.bf16.mxu0 0
  %280 = vmatpush1.bf16.msra.mxu0 0
  %281 = vmatprep.subr.bf16.mxu0 0
  %282 = vmatpush1.bf16.msra.mxu0 0
  %283 = vmatprep.subr.bf16.mxu0 0
  %284 = vmatpush1.bf16.msra.mxu0 0
  %285 = vmatprep.mubr.bf16.mxu0 0
  %286 = vmatmul.mubr.bf16.gmra.mrb[0].mxu0 %v211
  %v287 = vpop.f32.mrb[0].mxu0
  %v288 = vadd.f32 %v248, %v287
  %v289 = vpop.f32.mrb[0].mxu0
  %v290 = vpop.f32.mrb[0].mxu0
  %v291 = vpop.f32.mrb[0].mxu0
  %292 = vdwg.mxu0
  %293 = vst [vmem:[%s3] sm:$0x3] %v288
  // Predicated region
  $region14: #{forward.9} parent=0 // pred_check
    _
  $region15: #{forward.9} parent=0 // pred_check_branch
    %295 = sbr.rel (0) target = $region17
  $region16: #{forward.9} parent=0 // pred_region
    _
  $region17: #{forward.9} parent=0 // pred_fallthru
    _
  // Predicated region
  $region18: #{forward.9} parent=0 // pred_check
    _
  $region19: #{forward.9} parent=0 // pred_check_branch
    %297 = sbr.rel (0) target = $region21
  $region20: #{forward.9} parent=0 // pred_region
    _
  $region21: #{forward.9} parent=0 // pred_fallthru
    _

// kernel: forward.7
$region0: #{forward.7}
  #allocation0 [shape = 'u32[]', space=smem, size = 0x4, offset = 0x4, fixed_abs, tag = 'smem constant byte address 0x4 - core index']
  #allocation1 [shape = 'u32[144,128]{1,0:T(1,128)}', space=vmem, size = 0x12000, scoped, tag = 'internal scratch']
  %s0 = inlined_call_operand.vmem [shape: bf16[12,50], index: 0, kind: input, shape index: {}]
  %s1 = inlined_call_operand.vmem [shape: bf16[50,512], index: 1, kind: input, shape index: {}]
  %s2 = inlined_call_operand.vmem [shape: f32[1,512], index: 2, kind: input, shape index: {}]
  %s3 = inlined_call_operand.vmem [shape: f32[12,512], index: 3, kind: output, shape index: {}]
  %s4 = sld [smem:[#allocation0]]
  $region22: #{forward.7} parent=0
    _
  %s6 = ssub.s32 1, %s4
  %s7 = scalar_select 0, %s6, %s4
  // Predicated region
  $region2: #{forward.7} parent=0 // pred_check
    _
  $region3: #{forward.7} parent=0 // pred_check_branch
    %9 = sbr.rel (0) target = $region5
  $region4: #{forward.7} parent=0 // pred_region
    _
  $region5: #{forward.7} parent=0 // pred_fallthru
    _
  // Predicated region
  $region6: #{forward.7} parent=0 // pred_check
    _
  $region7: #{forward.7} parent=0 // pred_check_branch
    %11 = sbr.rel (0) target = $region9
  $region8: #{forward.7} parent=0 // pred_region
    _
  $region9: #{forward.7} parent=0 // pred_fallthru
    _
  // Predicated region
  $region10: #{forward.7} parent=0 // pred_check
    _
  $region11: #{forward.7} parent=0 // pred_check_branch
    %13 = sbr.rel (0) target = $region13
  $region12: #{forward.7} parent=0 // pred_region
    _
  $region13: #{forward.7} parent=0 // pred_fallthru
    _
  %v15 = vld [vmem:[%s0] sm:$0xf]
  %v16 = vld [vmem:[%s0 + $0x4] sm:$0x3]
  %v17 = vld [vmem:[%s1] sm:$0xff]
  %v18 = vld [vmem:[%s1 + $0x8] sm:$0xff]
  %v19 = vld [vmem:[%s1 + $0x10] sm:$0xff]
  %v20 = vld [vmem:[%s1 + $0x18] sm:$0xff]
  %v21 = vld [vmem:[%s1 + $0x20] sm:$0xff]
  %v22 = vld [vmem:[%s1 + $0x28] sm:$0xff]
  %v23 = vld [vmem:[%s1 + $0x30] sm:$0xff]
  %v24 = vld [vmem:[%s1 + $0x38] sm:$0xff]
  %v25 = vld [vmem:[%s1 + $0x40] sm:$0xff]
  %v26 = vld [vmem:[%s1 + $0x48] sm:$0xff]
  %v27 = vld [vmem:[%s1 + $0x50] sm:$0xff]
  %v28 = vld [vmem:[%s1 + $0x58] sm:$0xff]
  %v29 = vld [vmem:[%s1 + $0x60] sm:$0x11]
  %v30 = vld [vmem:[%s1 + $0x68] sm:$0x11]
  %v31 = vld [vmem:[%s2] sm:$0xf]
  %v33 = vlaneseq
  %v34 = vshrl.u32 %v33, 7
  %v35 = vsub.s32 0, %v34
  %v36 = vrot.slane %v31, %v35
  %v37 = vlaneseq
  %v38 = vshrl.u32 %v37, 7
  %v39 = vsub.s32 1, %v38
  %v40 = vrot.slane %v31, %v39
  %v41 = vlaneseq
  %v42 = vshrl.u32 %v41, 7
  %v43 = vsub.s32 2, %v42
  %v44 = vrot.slane %v31, %v43
  %v45 = vlaneseq
  %v46 = vshrl.u32 %v45, 7
  %v47 = vsub.s32 3, %v46
  %v48 = vrot.slane %v31, %v47
  %v55 = vunpack.c.l.b16 %v15
  %v56 = vunpack.c.l.b16 %v16
  %v57 = vpack.c.b16 %v56, %v55
  %v72 = vunpack.c.l.b16 %v17
  %v73 = vunpack.c.h.b16 %v17
  %v74 = vunpack.c.l.b16 %v18
  %v75 = vunpack.c.h.b16 %v18
  %v76 = vunpack.c.l.b16 %v19
  %v77 = vunpack.c.h.b16 %v19
  %v78 = vunpack.c.l.b16 %v20
  %v79 = vunpack.c.h.b16 %v20
  %v80 = vunpack.c.l.b16 %v21
  %v81 = vunpack.c.h.b16 %v21
  %v82 = vunpack.c.l.b16 %v22
  %v83 = vunpack.c.h.b16 %v22
  %v84 = vunpack.c.l.b16 %v23
  %v85 = vunpack.c.h.b16 %v23
  %v86 = vunpack.c.l.b16 %v24
  %v87 = vunpack.c.h.b16 %v24
  %v88 = vunpack.c.l.b16 %v25
  %v89 = vunpack.c.h.b16 %v25
  %v90 = vunpack.c.l.b16 %v26
  %v91 = vunpack.c.h.b16 %v26
  %v92 = vunpack.c.l.b16 %v27
  %v93 = vunpack.c.h.b16 %v27
  %v94 = vunpack.c.l.b16 %v28
  %v95 = vunpack.c.h.b16 %v28
  %v96 = vunpack.c.l.b16 %v29
  %v97 = vunpack.c.h.b16 %v29
  %v98 = vunpack.c.l.b16 %v30
  %v99 = vunpack.c.h.b16 %v30
  %v100 = vpack.c.b16 %v76, %v72
  %v101 = vpack.c.b16 %v77, %v73
  %v102 = vpack.c.b16 %v78, %v74
  %v103 = vpack.c.b16 %v79, %v75
  %v104 = vpack.c.b16 %v84, %v80
  %v105 = vpack.c.b16 %v85, %v81
  %v106 = vpack.c.b16 %v86, %v82
  %v107 = vpack.c.b16 %v87, %v83
  %v108 = vpack.c.b16 %v92, %v88
  %v109 = vpack.c.b16 %v93, %v89
  %v110 = vpack.c.b16 %v94, %v90
  %v111 = vpack.c.b16 %v95, %v91
  %v112 = vpack.c.b16 %v96, %v96
  %v113 = vpack.c.b16 %v97, %v97
  %v114 = vpack.c.b16 %v98, %v98
  %v115 = vpack.c.b16 %v99, %v99
  %vm128 = vcmask 408576
  %v130 = vsel %vm128, %v57, 0
  %vm132 = vcmask 1040384
  %v134 = vsel %vm132, %v112, 0
  %v137 = vsel %vm132, %v113, 0
  %v140 = vsel %vm132, %v114, 0
  %v143 = vsel %vm132, %v115, 0
  %145 = vmatprep.subr.bf16.mxu0 %v101
  %146 = vmatpush1.bf16.msra.mxu0 %v100
  %147 = vmatprep.subr.bf16.mxu0 %v105
  %148 = vmatpush1.bf16.msra.mxu0 %v104
  %149 = vmatprep.subr.bf16.mxu0 %v109
  %150 = vmatpush1.bf16.msra.mxu0 %v108
  %151 = vmatprep.subr.bf16.mxu0 %v137
  %152 = vmatpush1.bf16.msra.mxu0 %v134
  %153 = vmatprep.subr.bf16.mxu0 0
  %154 = vmatpush1.bf16.msra.mxu0 0
  %155 = vmatprep.subr.bf16.mxu0 0
  %156 = vmatpush1.bf16.msra.mxu0 0
  %157 = vmatprep.subr.bf16.mxu0 0
  %158 = vmatpush1.bf16.msra.mxu0 0
  %159 = vmatprep.subr.bf16.mxu0 0
  %160 = vmatpush1.bf16.msra.mxu0 0
  %161 = vmatprep.subr.bf16.mxu0 0
  %162 = vmatpush1.bf16.msra.mxu0 0
  %163 = vmatprep.subr.bf16.mxu0 0
  %164 = vmatpush1.bf16.msra.mxu0 0
  %165 = vmatprep.subr.bf16.mxu0 0
  %166 = vmatpush1.bf16.msra.mxu0 0
  %167 = vmatprep.subr.bf16.mxu0 0
  %168 = vmatpush1.bf16.msra.mxu0 0
  %169 = vmatprep.subr.bf16.mxu0 0
  %170 = vmatpush1.bf16.msra.mxu0 0
  %171 = vmatprep.subr.bf16.mxu0 0
  %172 = vmatpush1.bf16.msra.mxu0 0
  %173 = vmatprep.subr.bf16.mxu0 0
  %174 = vmatpush1.bf16.msra.mxu0 0
  %175 = vmatprep.subr.bf16.mxu0 0
  %176 = vmatpush1.bf16.msra.mxu0 0
  %177 = vmatprep.mubr.bf16.mxu0 0
  %178 = vmatmul.mubr.bf16.gmra.mrb[0].mxu0 %v130
  %v179 = vpop.f32.mrb[0].mxu0
  %v180 = vadd.f32 %v36, %v179
  %v181 = vpop.f32.mrb[0].mxu0
  %v182 = vadd.f32 %v40, %v181
  %v183 = vpop.f32.mrb[0].mxu0
  %v184 = vadd.f32 %v36, %v183
  %v185 = vpop.f32.mrb[0].mxu0
  %v186 = vadd.f32 %v40, %v185
  %187 = vdwg.mxu0
  %188 = vmatprep.subr.bf16.mxu0 %v103
  %189 = vmatpush1.bf16.msra.mxu0 %v102
  %190 = vmatprep.subr.bf16.mxu0 %v107
  %191 = vmatpush1.bf16.msra.mxu0 %v106
  %192 = vmatprep.subr.bf16.mxu0 %v111
  %193 = vmatpush1.bf16.msra.mxu0 %v110
  %194 = vmatprep.subr.bf16.mxu0 %v143
  %195 = vmatpush1.bf16.msra.mxu0 %v140
  %196 = vmatprep.subr.bf16.mxu0 0
  %197 = vmatpush1.bf16.msra.mxu0 0
  %198 = vmatprep.subr.bf16.mxu0 0
  %199 = vmatpush1.bf16.msra.mxu0 0
  %200 = vmatprep.subr.bf16.mxu0 0
  %201 = vmatpush1.bf16.msra.mxu0 0
  %202 = vmatprep.subr.bf16.mxu0 0
  %203 = vmatpush1.bf16.msra.mxu0 0
  %204 = vmatprep.subr.bf16.mxu0 0
  %205 = vmatpush1.bf16.msra.mxu0 0
  %206 = vmatprep.subr.bf16.mxu0 0
  %207 = vmatpush1.bf16.msra.mxu0 0
  %208 = vmatprep.subr.bf16.mxu0 0
  %209 = vmatpush1.bf16.msra.mxu0 0
  %210 = vmatprep.subr.bf16.mxu0 0
  %211 = vmatpush1.bf16.msra.mxu0 0
  %212 = vmatprep.subr.bf16.mxu0 0
  %213 = vmatpush1.bf16.msra.mxu0 0
  %214 = vmatprep.subr.bf16.mxu0 0
  %215 = vmatpush1.bf16.msra.mxu0 0
  %216 = vmatprep.subr.bf16.mxu0 0
  %217 = vmatpush1.bf16.msra.mxu0 0
  %218 = vmatprep.subr.bf16.mxu0 0
  %219 = vmatpush1.bf16.msra.mxu0 0
  %220 = vmatprep.mubr.bf16.mxu0 0
  %221 = vmatmul.mubr.bf16.gmra.mrb[0].mxu0 %v130
  %v222 = vpop.f32.mrb[0].mxu0
  %v223 = vadd.f32 %v44, %v222
  %v224 = vpop.f32.mrb[0].mxu0
  %v225 = vadd.f32 %v48, %v224
  %v226 = vpop.f32.mrb[0].mxu0
  %v227 = vadd.f32 %v44, %v226
  %v228 = vpop.f32.mrb[0].mxu0
  %v229 = vadd.f32 %v48, %v228
  %230 = vdwg.mxu0
  %231 = vst [vmem:[%s3] sm:$0xff] %v180
  %232 = vst [vmem:[%s3 + $0x8] sm:$0xff] %v182
  %233 = vst [vmem:[%s3 + $0x10] sm:$0xff] %v223
  %234 = vst [vmem:[%s3 + $0x18] sm:$0xff] %v225
  %235 = vst [vmem:[%s3 + $0x20] sm:$0xf] %v184
  %236 = vst [vmem:[%s3 + $0x28] sm:$0xf] %v186
  %237 = vst [vmem:[%s3 + $0x30] sm:$0xf] %v227
  %238 = vst [vmem:[%s3 + $0x38] sm:$0xf] %v229
  // Predicated region
  $region14: #{forward.7} parent=0 // pred_check
    _
  $region15: #{forward.7} parent=0 // pred_check_branch
    %240 = sbr.rel (0) target = $region17
  $region16: #{forward.7} parent=0 // pred_region
    _
  $region17: #{forward.7} parent=0 // pred_fallthru
    _
  // Predicated region
  $region18: #{forward.7} parent=0 // pred_check
    _
  $region19: #{forward.7} parent=0 // pred_check_branch
    %242 = sbr.rel (0) target = $region21
  $region20: #{forward.7} parent=0 // pred_region
    _
  $region21: #{forward.7} parent=0 // pred_fallthru
    _

// kernel: forward.8
$region0: #{forward.8}
  #allocation0 [shape = 'u32[]', space=smem, size = 0x4, offset = 0x4, fixed_abs, tag = 'smem constant byte address 0x4 - core index']
  #allocation1 [shape = 'u32[144,128]{1,0:T(1,128)}', space=vmem, size = 0x12000, scoped, tag = 'internal scratch']
  %s0 = inlined_call_operand.vmem [shape: f32[6,2,512], index: 0, kind: input, shape index: {}]
  %s1 = inlined_call_operand.vmem [shape: s32[2,1], index: 1, kind: input, shape index: {}]
  %s2 = inlined_call_operand.vmem [shape: bf16[128,512], index: 2, kind: input, shape index: {}]
  %s3 = inlined_call_operand.vmem [shape: f32[2,128], index: 3, kind: output, shape index: {0}]
  %s4 = inlined_call_operand.vmem [shape: f32[2,128], index: 4, kind: output, shape index: {1}]
  %5 = xla_tuple %s3, %s4
  %s6 = sld [smem:[#allocation0]]
  $region30: #{forward.8} parent=0
    _
  %s8 = ssub.s32 1, %s6
  %s9 = scalar_select 0, %s8, %s6
  // Predicated region
  $region2: #{forward.8} parent=0 // pred_check
    _
  $region3: #{forward.8} parent=0 // pred_check_branch
    %11 = sbr.rel (0) target = $region5
  $region4: #{forward.8} parent=0 // pred_region
    _
  $region5: #{forward.8} parent=0 // pred_fallthru
    _
  // Predicated region
  $region6: #{forward.8} parent=0 // pred_check
    _
  $region7: #{forward.8} parent=0 // pred_check_branch
    %13 = sbr.rel (0) target = $region9
  $region8: #{forward.8} parent=0 // pred_region
    _
  $region9: #{forward.8} parent=0 // pred_fallthru
    _
  // Predicated region
  $region10: #{forward.8} parent=0 // pred_check
    _
  $region11: #{forward.8} parent=0 // pred_check_branch
    %15 = sbr.rel (0) target = $region13
  $region12: #{forward.8} parent=0 // pred_region
    _
  $region13: #{forward.8} parent=0 // pred_fallthru
    _
  %v17 = vld [vmem:[%s1] sm:$0x3]
  %v18 = vld [vmem:[%s0] sm:$0xff]
  %v19 = vld [vmem:[%s2] sm:$0xff]
  %v20 = vld [vmem:[%s2 + $0x8] sm:$0xff]
  %v21 = vld [vmem:[%s2 + $0x10] sm:$0xff]
  %v22 = vld [vmem:[%s2 + $0x18] sm:$0xff]
  %v23 = vld [vmem:[%s2 + $0x20] sm:$0xff]
  %v24 = vld [vmem:[%s2 + $0x28] sm:$0xff]
  %v25 = vld [vmem:[%s2 + $0x30] sm:$0xff]
  %v26 = vld [vmem:[%s2 + $0x38] sm:$0xff]
  %v27 = vld [vmem:[%s2 + $0x40] sm:$0xff]
  %v28 = vld [vmem:[%s2 + $0x48] sm:$0xff]
  %v29 = vld [vmem:[%s2 + $0x50] sm:$0xff]
  %v30 = vld [vmem:[%s2 + $0x58] sm:$0xff]
  %v31 = vld [vmem:[%s2 + $0x60] sm:$0xff]
  %v32 = vld [vmem:[%s2 + $0x68] sm:$0xff]
  %v33 = vld [vmem:[%s2 + $0x70] sm:$0xff]
  %v34 = vld [vmem:[%s2 + $0x78] sm:$0xff]
  %v35 = vld [vmem:[%s2 + $0x80] sm:$0xff]
  %v36 = vld [vmem:[%s2 + $0x88] sm:$0xff]
  %v37 = vld [vmem:[%s2 + $0x90] sm:$0xff]
  %v38 = vld [vmem:[%s2 + $0x98] sm:$0xff]
  %v39 = vld [vmem:[%s2 + $0xa0] sm:$0xff]
  %v40 = vld [vmem:[%s2 + $0xa8] sm:$0xff]
  %v41 = vld [vmem:[%s2 + $0xb0] sm:$0xff]
  %v42 = vld [vmem:[%s2 + $0xb8] sm:$0xff]
  %v43 = vld [vmem:[%s2 + $0xc0] sm:$0xff]
  %v44 = vld [vmem:[%s2 + $0xc8] sm:$0xff]
  %v45 = vld [vmem:[%s2 + $0xd0] sm:$0xff]
  %v46 = vld [vmem:[%s2 + $0xd8] sm:$0xff]
  %v47 = vld [vmem:[%s2 + $0xe0] sm:$0xff]
  %v48 = vld [vmem:[%s2 + $0xe8] sm:$0xff]
  %v49 = vld [vmem:[%s2 + $0xf0] sm:$0xff]
  %v50 = vld [vmem:[%s2 + $0xf8] sm:$0xff]
  %v83 = vunpack.c.l.b16 %v19
  %v84 = vunpack.c.h.b16 %v19
  %v85 = vunpack.c.l.b16 %v20
  %v86 = vunpack.c.h.b16 %v20
  %v87 = vunpack.c.l.b16 %v21
  %v88 = vunpack.c.h.b16 %v21
  %v89 = vunpack.c.l.b16 %v22
  %v90 = vunpack.c.h.b16 %v22
  %v91 = vunpack.c.l.b16 %v23
  %v92 = vunpack.c.h.b16 %v23
  %v93 = vunpack.c.l.b16 %v24
  %v94 = vunpack.c.h.b16 %v24
  %v95 = vunpack.c.l.b16 %v25
  %v96 = vunpack.c.h.b16 %v25
  %v97 = vunpack.c.l.b16 %v26
  %v98 = vunpack.c.h.b16 %v26
  %v99 = vunpack.c.l.b16 %v27
  %v100 = vunpack.c.h.b16 %v27
  %v101 = vunpack.c.l.b16 %v28
  %v102 = vunpack.c.h.b16 %v28
  %v103 = vunpack.c.l.b16 %v29
  %v104 = vunpack.c.h.b16 %v29
  %v105 = vunpack.c.l.b16 %v30
  %v106 = vunpack.c.h.b16 %v30
  %v107 = vunpack.c.l.b16 %v31
  %v108 = vunpack.c.h.b16 %v31
  %v109 = vunpack.c.l.b16 %v32
  %v110 = vunpack.c.h.b16 %v32
  %v111 = vunpack.c.l.b16 %v33
  %v112 = vunpack.c.h.b16 %v33
  %v113 = vunpack.c.l.b16 %v34
  %v114 = vunpack.c.h.b16 %v34
  %v115 = vunpack.c.l.b16 %v35
  %v116 = vunpack.c.h.b16 %v35
  %v117 = vunpack.c.l.b16 %v36
  %v118 = vunpack.c.h.b16 %v36
  %v119 = vunpack.c.l.b16 %v37
  %v120 = vunpack.c.h.b16 %v37
  %v121 = vunpack.c.l.b16 %v38
  %v122 = vunpack.c.h.b16 %v38
  %v123 = vunpack.c.l.b16 %v39
  %v124 = vunpack.c.h.b16 %v39
  %v125 = vunpack.c.l.b16 %v40
  %v126 = vunpack.c.h.b16 %v40
  %v127 = vunpack.c.l.b16 %v41
  %v128 = vunpack.c.h.b16 %v41
  %v129 = vunpack.c.l.b16 %v42
  %v130 = vunpack.c.h.b16 %v42
  %v131 = vunpack.c.l.b16 %v43
  %v132 = vunpack.c.h.b16 %v43
  %v133 = vunpack.c.l.b16 %v44
  %v134 = vunpack.c.h.b16 %v44
  %v135 = vunpack.c.l.b16 %v45
  %v136 = vunpack.c.h.b16 %v45
  %v137 = vunpack.c.l.b16 %v46
  %v138 = vunpack.c.h.b16 %v46
  %v139 = vunpack.c.l.b16 %v47
  %v140 = vunpack.c.h.b16 %v47
  %v141 = vunpack.c.l.b16 %v48
  %v142 = vunpack.c.h.b16 %v48
  %v143 = vunpack.c.l.b16 %v49
  %v144 = vunpack.c.h.b16 %v49
  %v145 = vunpack.c.l.b16 %v50
  %v146 = vunpack.c.h.b16 %v50
  %v147 = vpack.c.b16 %v87, %v83
  %v148 = vpack.c.b16 %v88, %v84
  %v149 = vpack.c.b16 %v89, %v85
  %v150 = vpack.c.b16 %v90, %v86
  %v151 = vpack.c.b16 %v95, %v91
  %v152 = vpack.c.b16 %v96, %v92
  %v153 = vpack.c.b16 %v97, %v93
  %v154 = vpack.c.b16 %v98, %v94
  %v155 = vpack.c.b16 %v103, %v99
  %v156 = vpack.c.b16 %v104, %v100
  %v157 = vpack.c.b16 %v105, %v101
  %v158 = vpack.c.b16 %v106, %v102
  %v159 = vpack.c.b16 %v111, %v107
  %v160 = vpack.c.b16 %v112, %v108
  %v161 = vpack.c.b16 %v113, %v109
  %v162 = vpack.c.b16 %v114, %v110
  %v163 = vpack.c.b16 %v119, %v115
  %v164 = vpack.c.b16 %v120, %v116
  %v165 = vpack.c.b16 %v121, %v117
  %v166 = vpack.c.b16 %v122, %v118
  %v167 = vpack.c.b16 %v127, %v123
  %v168 = vpack.c.b16 %v128, %v124
  %v169 = vpack.c.b16 %v129, %v125
  %v170 = vpack.c.b16 %v130, %v126
  %v171 = vpack.c.b16 %v135, %v131
  %v172 = vpack.c.b16 %v136, %v132
  %v173 = vpack.c.b16 %v137, %v133
  %v174 = vpack.c.b16 %v138, %v134
  %v175 = vpack.c.b16 %v143, %v139
  %v176 = vpack.c.b16 %v144, %v140
  %v177 = vpack.c.b16 %v145, %v141
  %v178 = vpack.c.b16 %v146, %v142
  %211 = vmatprep.subr.bf16.mxu0 %v148
  %212 = vmatpush1.bf16.msra.mxu0 %v147
  %213 = vmatprep.subr.bf16.mxu0 %v152
  %214 = vmatpush1.bf16.msra.mxu0 %v151
  %215 = vmatprep.subr.bf16.mxu0 %v156
  %216 = vmatpush1.bf16.msra.mxu0 %v155
  %217 = vmatprep.subr.bf16.mxu0 %v160
  %218 = vmatpush1.bf16.msra.mxu0 %v159
  %219 = vmatprep.subr.bf16.mxu0 %v164
  %220 = vmatpush1.bf16.msra.mxu0 %v163
  %221 = vmatprep.subr.bf16.mxu0 %v168
  %222 = vmatpush1.bf16.msra.mxu0 %v167
  %223 = vmatprep.subr.bf16.mxu0 %v172
  %224 = vmatpush1.bf16.msra.mxu0 %v171
  %225 = vmatprep.subr.bf16.mxu0 %v176
  %226 = vmatpush1.bf16.msra.mxu0 %v175
  %227 = vmatprep.subr.bf16.mxu0 0
  %228 = vmatpush1.bf16.msra.mxu0 0
  %229 = vmatprep.subr.bf16.mxu0 0
  %230 = vmatpush1.bf16.msra.mxu0 0
  %231 = vmatprep.subr.bf16.mxu0 0
  %232 = vmatpush1.bf16.msra.mxu0 0
  %233 = vmatprep.subr.bf16.mxu0 0
  %234 = vmatpush1.bf16.msra.mxu0 0
  %235 = vmatprep.subr.bf16.mxu0 0
  %236 = vmatpush1.bf16.msra.mxu0 0
  %237 = vmatprep.subr.bf16.mxu0 0
  %238 = vmatpush1.bf16.msra.mxu0 0
  %239 = vmatprep.subr.bf16.mxu0 0
  %240 = vmatpush1.bf16.msra.mxu0 0
  %241 = vmatprep.subr.bf16.mxu0 0
  %242 = vmatpush1.bf16.msra.mxu0 0
  %243 = vmatprep.mubr.bf16.mxu0 0
  %244 = vmatmul.mubr.bf16.gmra.mrb[0].mxu0 0
  %v245 = vpop.f32.mrb[0].mxu0
  %v246 = vadd.f32 0.0, %v245
  %v247 = vpop.f32.mrb[0].mxu0
  %v248 = vadd.f32 0.0, %v247
  %v249 = vpop.f32.mrb[0].mxu0
  %v250 = vpop.f32.mrb[0].mxu0
  %251 = vdwg.mxu0
  %252 = vmatprep.subr.bf16.mxu0 %v150
  %253 = vmatpush1.bf16.msra.mxu0 %v149
  %254 = vmatprep.subr.bf16.mxu0 %v154
  %255 = vmatpush1.bf16.msra.mxu0 %v153
  %256 = vmatprep.subr.bf16.mxu0 %v158
  %257 = vmatpush1.bf16.msra.mxu0 %v157
  %258 = vmatprep.subr.bf16.mxu0 %v162
  %259 = vmatpush1.bf16.msra.mxu0 %v161
  %260 = vmatprep.subr.bf16.mxu0 %v166
  %261 = vmatpush1.bf16.msra.mxu0 %v165
  %262 = vmatprep.subr.bf16.mxu0 %v170
  %263 = vmatpush1.bf16.msra.mxu0 %v169
  %264 = vmatprep.subr.bf16.mxu0 %v174
  %265 = vmatpush1.bf16.msra.mxu0 %v173
  %266 = vmatprep.subr.bf16.mxu0 %v178
  %267 = vmatpush1.bf16.msra.mxu0 %v177
  %268 = vmatprep.subr.bf16.mxu0 0
  %269 = vmatpush1.bf16.msra.mxu0 0
  %270 = vmatprep.subr.bf16.mxu0 0
  %271 = vmatpush1.bf16.msra.mxu0 0
  %272 = vmatprep.subr.bf16.mxu0 0
  %273 = vmatpush1.bf16.msra.mxu0 0
  %274 = vmatprep.subr.bf16.mxu0 0
  %275 = vmatpush1.bf16.msra.mxu0 0
  %276 = vmatprep.subr.bf16.mxu0 0
  %277 = vmatpush1.bf16.msra.mxu0 0
  %278 = vmatprep.subr.bf16.mxu0 0
  %279 = vmatpush1.bf16.msra.mxu0 0
  %280 = vmatprep.subr.bf16.mxu0 0
  %281 = vmatpush1.bf16.msra.mxu0 0
  %282 = vmatprep.subr.bf16.mxu0 0
  %283 = vmatpush1.bf16.msra.mxu0 0
  %284 = vmatprep.mubr.bf16.mxu0 0
  %285 = vmatmul.mubr.bf16.gmra.mrb[0].mxu0 0
  %v286 = vpop.f32.mrb[0].mxu0
  %v287 = vadd.f32 0.0, %v286
  %v288 = vpop.f32.mrb[0].mxu0
  %v289 = vadd.f32 0.0, %v288
  %v290 = vpop.f32.mrb[0].mxu0
  %v291 = vpop.f32.mrb[0].mxu0
  %292 = vdwg.mxu0
  %v297 = vcombine.low %v246, %v248
  %v298 = vcombine.low %v287, %v289
  %v300 = vunpack.c.l.s4 1983009808
  %v301 = vunpack.c.0.s8 %v300
  %v302 = vlaneseq
  %v303 = vshrl.u32 %v302, 7
  %v304 = vsub.s32 %v301, %v303
  %v305 = vrot.slane %v297, %v304
  %v307 = vunpack.c.l.s4 1983009808
  %v308 = vunpack.c.0.s8 %v307
  %v309 = vlaneseq
  %v310 = vshrl.u32 %v309, 7
  %v311 = vsub.s32 %v308, %v310
  %v312 = vrot.slane %v298, %v311
  %v313 = vcombine.low %v305, %v312
  %v315 = vadd.f32 %v18, %v313
  %v316 = vxor.u32 %v315, 2147483648
  %v317 = vmul.f32 %v316, 1.442695
  %v318 = vpow.pop %v317
  %v319 = vadd.f32 %v318, 1.0
  %v320 = vrcp.pop %v319
  %v321 = vmul.f32 1.0, %v320
  %v323 = vrot.slane %v315, 2
  %v325 = vxor.u32 %v323, 2147483648
  %v326 = vmul.f32 %v325, 1.442695
  %v327 = vpow.pop %v326
  %v328 = vadd.f32 %v327, 1.0
  %v329 = vrcp.pop %v328
  %v330 = vmul.f32 1.0, %v329
  %v331 = vrot.slane %v315, 4
  %v333 = vtanh.pop %v331
  %v334 = vrot.slane %v315, 6
  %v336 = vxor.u32 %v334, 2147483648
  %v337 = vmul.f32 %v336, 1.442695
  %v338 = vpow.pop %v337
  %v339 = vadd.f32 %v338, 1.0
  %v340 = vrcp.pop %v339
  %v341 = vmul.f32 1.0, %v340
  %v342 = vmul.f32 %v330, 0.0
  %v343 = vmul.f32 %v321, %v333
  %v344 = vadd.f32 %v342, %v343
  %v345 = vtanh.pop %v344
  %v346 = vmul.f32 %v341, %v345
  %vm347 = vcmp.gt.s32.totalorder %v17, 0
  %v348 = vsel %vm347, 1, 0
  %349 = vset.pattern.permute.xlu0 0
  %350 = vperm.xlu0 %349, %v348
  %v351 = vpop.permute.xlu0 %350
  %vm352 = vcmp.eq.s32.totalorder %v351, 1
  %v353 = vsel %vm352, %v346, 0.0
  %v354 = vsel %vm352, %v344, 0.0
  %s355 = scalar_lea.vmem %s0, 8
  %v356 = vld [vmem:[%s355] sm:$0xff]
  %v357 = vpack.c.bf16 %v353, %v353
  %358 = vmatprep.subr.bf16.mxu0 %v148
  %359 = vmatpush1.bf16.msra.mxu0 %v147
  %360 = vmatprep.subr.bf16.mxu0 %v152
  %361 = vmatpush1.bf16.msra.mxu0 %v151
  %362 = vmatprep.subr.bf16.mxu0 %v156
  %363 = vmatpush1.bf16.msra.mxu0 %v155
  %364 = vmatprep.subr.bf16.mxu0 %v160
  %365 = vmatpush1.bf16.msra.mxu0 %v159
  %366 = vmatprep.subr.bf16.mxu0 %v164
  %367 = vmatpush1.bf16.msra.mxu0 %v163
  %368 = vmatprep.subr.bf16.mxu0 %v168
  %369 = vmatpush1.bf16.msra.mxu0 %v167
  %370 = vmatprep.subr.bf16.mxu0 %v172
  %371 = vmatpush1.bf16.msra.mxu0 %v171
  %372 = vmatprep.subr.bf16.mxu0 %v176
  %373 = vmatpush1.bf16.msra.mxu0 %v175
  %374 = vmatprep.subr.bf16.mxu0 0
  %375 = vmatpush1.bf16.msra.mxu0 0
  %376 = vmatprep.subr.bf16.mxu0 0
  %377 = vmatpush1.bf16.msra.mxu0 0
  %378 = vmatprep.subr.bf16.mxu0 0
  %379 = vmatpush1.bf16.msra.mxu0 0
  %380 = vmatprep.subr.bf16.mxu0 0
  %381 = vmatpush1.bf16.msra.mxu0 0
  %382 = vmatprep.subr.bf16.mxu0 0
  %383 = vmatpush1.bf16.msra.mxu0 0
  %384 = vmatprep.subr.bf16.mxu0 0
  %385 = vmatpush1.bf16.msra.mxu0 0
  %386 = vmatprep.subr.bf16.mxu0 0
  %387 = vmatpush1.bf16.msra.mxu0 0
  %388 = vmatprep.subr.bf16.mxu0 0
  %389 = vmatpush1.bf16.msra.mxu0 0
  %390 = vmatprep.mubr.bf16.mxu0 0
  %391 = vmatmul.mubr.bf16.gmra.mrb[0].mxu0 %v357
  %v392 = vpop.f32.mrb[0].mxu0
  %v393 = vadd.f32 0.0, %v392
  %v394 = vpop.f32.mrb[0].mxu0
  %v395 = vadd.f32 0.0, %v394
  %v396 = vpop.f32.mrb[0].mxu0
  %v397 = vpop.f32.mrb[0].mxu0
  %398 = vdwg.mxu0
  %399 = vmatprep.subr.bf16.mxu0 %v150
  %400 = vmatpush1.bf16.msra.mxu0 %v149
  %401 = vmatprep.subr.bf16.mxu0 %v154
  %402 = vmatpush1.bf16.msra.mxu0 %v153
  %403 = vmatprep.subr.bf16.mxu0 %v158
  %404 = vmatpush1.bf16.msra.mxu0 %v157
  %405 = vmatprep.subr.bf16.mxu0 %v162
  %406 = vmatpush1.bf16.msra.mxu0 %v161
  %407 = vmatprep.subr.bf16.mxu0 %v166
  %408 = vmatpush1.bf16.msra.mxu0 %v165
  %409 = vmatprep.subr.bf16.mxu0 %v170
  %410 = vmatpush1.bf16.msra.mxu0 %v169
  %411 = vmatprep.subr.bf16.mxu0 %v174
  %412 = vmatpush1.bf16.msra.mxu0 %v173
  %413 = vmatprep.subr.bf16.mxu0 %v178
  %414 = vmatpush1.bf16.msra.mxu0 %v177
  %415 = vmatprep.subr.bf16.mxu0 0
  %416 = vmatpush1.bf16.msra.mxu0 0
  %417 = vmatprep.subr.bf16.mxu0 0
  %418 = vmatpush1.bf16.msra.mxu0 0
  %419 = vmatprep.subr.bf16.mxu0 0
  %420 = vmatpush1.bf16.msra.mxu0 0
  %421 = vmatprep.subr.bf16.mxu0 0
  %422 = vmatpush1.bf16.msra.mxu0 0
  %423 = vmatprep.subr.bf16.mxu0 0
  %424 = vmatpush1.bf16.msra.mxu0 0
  %425 = vmatprep.subr.bf16.mxu0 0
  %426 = vmatpush1.bf16.msra.mxu0 0
  %427 = vmatprep.subr.bf16.mxu0 0
  %428 = vmatpush1.bf16.msra.mxu0 0
  %429 = vmatprep.subr.bf16.mxu0 0
  %430 = vmatpush1.bf16.msra.mxu0 0
  %431 = vmatprep.mubr.bf16.mxu0 0
  %432 = vmatmul.mubr.bf16.gmra.mrb[0].mxu0 %v357
  %v433 = vpop.f32.mrb[0].mxu0
  %v434 = vadd.f32 0.0, %v433
  %v435 = vpop.f32.mrb[0].mxu0
  %v436 = vadd.f32 0.0, %v435
  %v437 = vpop.f32.mrb[0].mxu0
  %v438 = vpop.f32.mrb[0].mxu0
  %439 = vdwg.mxu0
  %v444 = vcombine.low %v393, %v395
  %v445 = vcombine.low %v434, %v436
  %v447 = vunpack.c.l.s4 1983009808
  %v448 = vunpack.c.0.s8 %v447
  %v449 = vlaneseq
  %v450 = vshrl.u32 %v449, 7
  %v451 = vsub.s32 %v448, %v450
  %v452 = vrot.slane %v444, %v451
  %v454 = vunpack.c.l.s4 1983009808
  %v455 = vunpack.c.0.s8 %v454
  %v456 = vlaneseq
  %v457 = vshrl.u32 %v456, 7
  %v458 = vsub.s32 %v455, %v457
  %v459 = vrot.slane %v445, %v458
  %v460 = vcombine.low %v452, %v459
  %v462 = vadd.f32 %v356, %v460
  %v463 = vxor.u32 %v462, 2147483648
  %v464 = vmul.f32 %v463, 1.442695
  %v465 = vpow.pop %v464
  %v466 = vadd.f32 %v465, 1.0
  %v467 = vrcp.pop %v466
  %v468 = vmul.f32 1.0, %v467
  %v470 = vrot.slane %v462, 2
  %v472 = vxor.u32 %v470, 2147483648
  %v473 = vmul.f32 %v472, 1.442695
  %v474 = vpow.pop %v473
  %v475 = vadd.f32 %v474, 1.0
  %v476 = vrcp.pop %v475
  %v477 = vmul.f32 1.0, %v476
  %v478 = vrot.slane %v462, 4
  %v480 = vtanh.pop %v478
  %v481 = vrot.slane %v462, 6
  %v483 = vxor.u32 %v481, 2147483648
  %v484 = vmul.f32 %v483, 1.442695
  %v485 = vpow.pop %v484
  %v486 = vadd.f32 %v485, 1.0
  %v487 = vrcp.pop %v486
  %v488 = vmul.f32 1.0, %v487
  %v489 = vmul.f32 %v477, %v354
  %v490 = vmul.f32 %v468, %v480
  %v491 = vadd.f32 %v489, %v490
  %v492 = vtanh.pop %v491
  %v493 = vmul.f32 %v488, %v492
  %vm494 = vcmp.gt.s32.totalorder %v17, 1
  %v495 = vsel %vm494, 1, 0
  %496 = vset.pattern.permute.xlu0 0
  %497 = vperm.xlu0 %496, %v495
  %v498 = vpop.permute.xlu0 %497
  %vm499 = vcmp.eq.s32.totalorder %v498, 1
  %v500 = vsel %vm499, %v493, %v353
  %v501 = vsel %vm499, %v491, %v354
  %s502 = scalar_lea.vmem %s0, 16
  %v503 = vld [vmem:[%s502] sm:$0xff]
  %v504 = vpack.c.bf16 %v500, %v500
  %505 = vmatprep.subr.bf16.mxu0 %v148
  %506 = vmatpush1.bf16.msra.mxu0 %v147
  %507 = vmatprep.subr.bf16.mxu0 %v152
  %508 = vmatpush1.bf16.msra.mxu0 %v151
  %509 = vmatprep.subr.bf16.mxu0 %v156
  %510 = vmatpush1.bf16.msra.mxu0 %v155
  %511 = vmatprep.subr.bf16.mxu0 %v160
  %512 = vmatpush1.bf16.msra.mxu0 %v159
  %513 = vmatprep.subr.bf16.mxu0 %v164
  %514 = vmatpush1.bf16.msra.mxu0 %v163
  %515 = vmatprep.subr.bf16.mxu0 %v168
  %516 = vmatpush1.bf16.msra.mxu0 %v167
  %517 = vmatprep.subr.bf16.mxu0 %v172
  %518 = vmatpush1.bf16.msra.mxu0 %v171
  %519 = vmatprep.subr.bf16.mxu0 %v176
  %520 = vmatpush1.bf16.msra.mxu0 %v175
  %521 = vmatprep.subr.bf16.mxu0 0
  %522 = vmatpush1.bf16.msra.mxu0 0
  %523 = vmatprep.subr.bf16.mxu0 0
  %524 = vmatpush1.bf16.msra.mxu0 0
  %525 = vmatprep.subr.bf16.mxu0 0
  %526 = vmatpush1.bf16.msra.mxu0 0
  %527 = vmatprep.subr.bf16.mxu0 0
  %528 = vmatpush1.bf16.msra.mxu0 0
  %529 = vmatprep.subr.bf16.mxu0 0
  %530 = vmatpush1.bf16.msra.mxu0 0
  %531 = vmatprep.subr.bf16.mxu0 0
  %532 = vmatpush1.bf16.msra.mxu0 0
  %533 = vmatprep.subr.bf16.mxu0 0
  %534 = vmatpush1.bf16.msra.mxu0 0
  %535 = vmatprep.subr.bf16.mxu0 0
  %536 = vmatpush1.bf16.msra.mxu0 0
  %537 = vmatprep.mubr.bf16.mxu0 0
  %538 = vmatmul.mubr.bf16.gmra.mrb[0].mxu0 %v504
  %v539 = vpop.f32.mrb[0].mxu0
  %v540 = vadd.f32 0.0, %v539
  %v541 = vpop.f32.mrb[0].mxu0
  %v542 = vadd.f32 0.0, %v541
  %v543 = vpop.f32.mrb[0].mxu0
  %v544 = vpop.f32.mrb[0].mxu0
  %545 = vdwg.mxu0
  %546 = vmatprep.subr.bf16.mxu0 %v150
  %547 = vmatpush1.bf16.msra.mxu0 %v149
  %548 = vmatprep.subr.bf16.mxu0 %v154
  %549 = vmatpush1.bf16.msra.mxu0 %v153
  %550 = vmatprep.subr.bf16.mxu0 %v158
  %551 = vmatpush1.bf16.msra.mxu0 %v157
  %552 = vmatprep.subr.bf16.mxu0 %v162
  %553 = vmatpush1.bf16.msra.mxu0 %v161
  %554 = vmatprep.subr.bf16.mxu0 %v166
  %555 = vmatpush1.bf16.msra.mxu0 %v165
  %556 = vmatprep.subr.bf16.mxu0 %v170
  %557 = vmatpush1.bf16.msra.mxu0 %v169
  %558 = vmatprep.subr.bf16.mxu0 %v174
  %559 = vmatpush1.bf16.msra.mxu0 %v173
  %560 = vmatprep.subr.bf16.mxu0 %v178
  %561 = vmatpush1.bf16.msra.mxu0 %v177
  %562 = vmatprep.subr.bf16.mxu0 0
  %563 = vmatpush1.bf16.msra.mxu0 0
  %564 = vmatprep.subr.bf16.mxu0 0
  %565 = vmatpush1.bf16.msra.mxu0 0
  %566 = vmatprep.subr.bf16.mxu0 0
  %567 = vmatpush1.bf16.msra.mxu0 0
  %568 = vmatprep.subr.bf16.mxu0 0
  %569 = vmatpush1.bf16.msra.mxu0 0
  %570 = vmatprep.subr.bf16.mxu0 0
  %571 = vmatpush1.bf16.msra.mxu0 0
  %572 = vmatprep.subr.bf16.mxu0 0
  %573 = vmatpush1.bf16.msra.mxu0 0
  %574 = vmatprep.subr.bf16.mxu0 0
  %575 = vmatpush1.bf16.msra.mxu0 0
  %576 = vmatprep.subr.bf16.mxu0 0
  %577 = vmatpush1.bf16.msra.mxu0 0
  %578 = vmatprep.mubr.bf16.mxu0 0
  %579 = vmatmul.mubr.bf16.gmra.mrb[0].mxu0 %v504
  %v580 = vpop.f32.mrb[0].mxu0
  %v581 = vadd.f32 0.0, %v580
  %v582 = vpop.f32.mrb[0].mxu0
  %v583 = vadd.f32 0.0, %v582
  %v584 = vpop.f32.mrb[0].mxu0
  %v585 = vpop.f32.mrb[0].mxu0
  %586 = vdwg.mxu0
  %v591 = vcombine.low %v540, %v542
  %v592 = vcombine.low %v581, %v583
  %v594 = vunpack.c.l.s4 1983009808
  %v595 = vunpack.c.0.s8 %v594
  %v596 = vlaneseq
  %v597 = vshrl.u32 %v596, 7
  %v598 = vsub.s32 %v595, %v597
  %v599 = vrot.slane %v591, %v598
  %v601 = vunpack.c.l.s4 1983009808
  %v602 = vunpack.c.0.s8 %v601
  %v603 = vlaneseq
  %v604 = vshrl.u32 %v603, 7
  %v605 = vsub.s32 %v602, %v604
  %v606 = vrot.slane %v592, %v605
  %v607 = vcombine.low %v599, %v606
  %v609 = vadd.f32 %v503, %v607
  %v610 = vxor.u32 %v609, 2147483648
  %v611 = vmul.f32 %v610, 1.442695
  %v612 = vpow.pop %v611
  %v613 = vadd.f32 %v612, 1.0
  %v614 = vrcp.pop %v613
  %v615 = vmul.f32 1.0, %v614
  %v617 = vrot.slane %v609, 2
  %v619 = vxor.u32 %v617, 2147483648
  %v620 = vmul.f32 %v619, 1.442695
  %v621 = vpow.pop %v620
  %v622 = vadd.f32 %v621, 1.0
  %v623 = vrcp.pop %v622
  %v624 = vmul.f32 1.0, %v623
  %v625 = vrot.slane %v609, 4
  %v627 = vtanh.pop %v625
  %v628 = vrot.slane %v609, 6
  %v630 = vxor.u32 %v628, 2147483648
  %v631 = vmul.f32 %v630, 1.442695
  %v632 = vpow.pop %v631
  %v633 = vadd.f32 %v632, 1.0
  %v634 = vrcp.pop %v633
  %v635 = vmul.f32 1.0, %v634
  %v636 = vmul.f32 %v624, %v501
  %v637 = vmul.f32 %v615, %v627
  %v638 = vadd.f32 %v636, %v637
  %v639 = vtanh.pop %v638
  %v640 = vmul.f32 %v635, %v639
  %vm641 = vcmp.gt.s32.totalorder %v17, 2
  %v642 = vsel %vm641, 1, 0
  %643 = vset.pattern.permute.xlu0 0
  %644 = vperm.xlu0 %643, %v642
  %v645 = vpop.permute.xlu0 %644
  %vm646 = vcmp.eq.s32.totalorder %v645, 1
  %v647 = vsel %vm646, %v640, %v500
  %v648 = vsel %vm646, %v638, %v501
  %s649 = scalar_lea.vmem %s0, 24
  %v650 = vld [vmem:[%s649] sm:$0xff]
  %v651 = vpack.c.bf16 %v647, %v647
  %652 = vmatprep.subr.bf16.mxu0 %v148
  %653 = vmatpush1.bf16.msra.mxu0 %v147
  %654 = vmatprep.subr.bf16.mxu0 %v152
  %655 = vmatpush1.bf16.msra.mxu0 %v151
  %656 = vmatprep.subr.bf16.mxu0 %v156
  %657 = vmatpush1.bf16.msra.mxu0 %v155
  %658 = vmatprep.subr.bf16.mxu0 %v160
  %659 = vmatpush1.bf16.msra.mxu0 %v159
  %660 = vmatprep.subr.bf16.mxu0 %v164
  %661 = vmatpush1.bf16.msra.mxu0 %v163
  %662 = vmatprep.subr.bf16.mxu0 %v168
  %663 = vmatpush1.bf16.msra.mxu0 %v167
  %664 = vmatprep.subr.bf16.mxu0 %v172
  %665 = vmatpush1.bf16.msra.mxu0 %v171
  %666 = vmatprep.subr.bf16.mxu0 %v176
  %667 = vmatpush1.bf16.msra.mxu0 %v175
  %668 = vmatprep.subr.bf16.mxu0 0
  %669 = vmatpush1.bf16.msra.mxu0 0
  %670 = vmatprep.subr.bf16.mxu0 0
  %671 = vmatpush1.bf16.msra.mxu0 0
  %672 = vmatprep.subr.bf16.mxu0 0
  %673 = vmatpush1.bf16.msra.mxu0 0
  %674 = vmatprep.subr.bf16.mxu0 0
  %675 = vmatpush1.bf16.msra.mxu0 0
  %676 = vmatprep.subr.bf16.mxu0 0
  %677 = vmatpush1.bf16.msra.mxu0 0
  %678 = vmatprep.subr.bf16.mxu0 0
  %679 = vmatpush1.bf16.msra.mxu0 0
  %680 = vmatprep.subr.bf16.mxu0 0
  %681 = vmatpush1.bf16.msra.mxu0 0
  %682 = vmatprep.subr.bf16.mxu0 0
  %683 = vmatpush1.bf16.msra.mxu0 0
  %684 = vmatprep.mubr.bf16.mxu0 0
  %685 = vmatmul.mubr.bf16.gmra.mrb[0].mxu0 %v651
  %v686 = vpop.f32.mrb[0].mxu0
  %v687 = vadd.f32 0.0, %v686
  %v688 = vpop.f32.mrb[0].mxu0
  %v689 = vadd.f32 0.0, %v688
  %v690 = vpop.f32.mrb[0].mxu0
  %v691 = vpop.f32.mrb[0].mxu0
  %692 = vdwg.mxu0
  %693 = vmatprep.subr.bf16.mxu0 %v150
  %694 = vmatpush1.bf16.msra.mxu0 %v149
  %695 = vmatprep.subr.bf16.mxu0 %v154
  %696 = vmatpush1.bf16.msra.mxu0 %v153
  %697 = vmatprep.subr.bf16.mxu0 %v158
  %698 = vmatpush1.bf16.msra.mxu0 %v157
  %699 = vmatprep.subr.bf16.mxu0 %v162
  %700 = vmatpush1.bf16.msra.mxu0 %v161
  %701 = vmatprep.subr.bf16.mxu0 %v166
  %702 = vmatpush1.bf16.msra.mxu0 %v165
  %703 = vmatprep.subr.bf16.mxu0 %v170
  %704 = vmatpush1.bf16.msra.mxu0 %v169
  %705 = vmatprep.subr.bf16.mxu0 %v174
  %706 = vmatpush1.bf16.msra.mxu0 %v173
  %707 = vmatprep.subr.bf16.mxu0 %v178
  %708 = vmatpush1.bf16.msra.mxu0 %v177
  %709 = vmatprep.subr.bf16.mxu0 0
  %710 = vmatpush1.bf16.msra.mxu0 0
  %711 = vmatprep.subr.bf16.mxu0 0
  %712 = vmatpush1.bf16.msra.mxu0 0
  %713 = vmatprep.subr.bf16.mxu0 0
  %714 = vmatpush1.bf16.msra.mxu0 0
  %715 = vmatprep.subr.bf16.mxu0 0
  %716 = vmatpush1.bf16.msra.mxu0 0
  %717 = vmatprep.subr.bf16.mxu0 0
  %718 = vmatpush1.bf16.msra.mxu0 0
  %719 = vmatprep.subr.bf16.mxu0 0
  %720 = vmatpush1.bf16.msra.mxu0 0
  %721 = vmatprep.subr.bf16.mxu0 0
  %722 = vmatpush1.bf16.msra.mxu0 0
  %723 = vmatprep.subr.bf16.mxu0 0
  %724 = vmatpush1.bf16.msra.mxu0 0
  %725 = vmatprep.mubr.bf16.mxu0 0
  %726 = vmatmul.mubr.bf16.gmra.mrb[0].mxu0 %v651
  %v727 = vpop.f32.mrb[0].mxu0
  %v728 = vadd.f32 0.0, %v727
  %v729 = vpop.f32.mrb[0].mxu0
  %v730 = vadd.f32 0.0, %v729
  %v731 = vpop.f32.mrb[0].mxu0
  %v732 = vpop.f32.mrb[0].mxu0
  %733 = vdwg.mxu0
  %v738 = vcombine.low %v687, %v689
  %v739 = vcombine.low %v728, %v730
  %v741 = vunpack.c.l.s4 1983009808
  %v742 = vunpack.c.0.s8 %v741
  %v743 = vlaneseq
  %v744 = vshrl.u32 %v743, 7
  %v745 = vsub.s32 %v742, %v744
  %v746 = vrot.slane %v738, %v745
  %v748 = vunpack.c.l.s4 1983009808
  %v749 = vunpack.c.0.s8 %v748
  %v750 = vlaneseq
  %v751 = vshrl.u32 %v750, 7
  %v752 = vsub.s32 %v749, %v751
  %v753 = vrot.slane %v739, %v752
  %v754 = vcombine.low %v746, %v753
  %v756 = vadd.f32 %v650, %v754
  %v757 = vxor.u32 %v756, 2147483648
  %v758 = vmul.f32 %v757, 1.442695
  %v759 = vpow.pop %v758
  %v760 = vadd.f32 %v759, 1.0
  %v761 = vrcp.pop %v760
  %v762 = vmul.f32 1.0, %v761
  %v764 = vrot.slane %v756, 2
  %v766 = vxor.u32 %v764, 2147483648
  %v767 = vmul.f32 %v766, 1.442695
  %v768 = vpow.pop %v767
  %v769 = vadd.f32 %v768, 1.0
  %v770 = vrcp.pop %v769
  %v771 = vmul.f32 1.0, %v770
  %v772 = vrot.slane %v756, 4
  %v774 = vtanh.pop %v772
  %v775 = vrot.slane %v756, 6
  %v777 = vxor.u32 %v775, 2147483648
  %v778 = vmul.f32 %v777, 1.442695
  %v779 = vpow.pop %v778
  %v780 = vadd.f32 %v779, 1.0
  %v781 = vrcp.pop %v780
  %v782 = vmul.f32 1.0, %v781
  %v783 = vmul.f32 %v771, %v648
  %v784 = vmul.f32 %v762, %v774
  %v785 = vadd.f32 %v783, %v784
  %v786 = vtanh.pop %v785
  %v787 = vmul.f32 %v782, %v786
  %vm788 = vcmp.gt.s32.totalorder %v17, 3
  %v789 = vsel %vm788, 1, 0
  %790 = vset.pattern.permute.xlu0 0
  %791 = vperm.xlu0 %790, %v789
  %v792 = vpop.permute.xlu0 %791
  %vm793 = vcmp.eq.s32.totalorder %v792, 1
  %v794 = vsel %vm793, %v787, %v647
  %v795 = vsel %vm793, %v785, %v648
  %s796 = scalar_lea.vmem %s0, 32
  %v797 = vld [vmem:[%s796] sm:$0xff]
  %v798 = vpack.c.bf16 %v794, %v794
  %799 = vmatprep.subr.bf16.mxu0 %v148
  %800 = vmatpush1.bf16.msra.mxu0 %v147
  %801 = vmatprep.subr.bf16.mxu0 %v152
  %802 = vmatpush1.bf16.msra.mxu0 %v151
  %803 = vmatprep.subr.bf16.mxu0 %v156
  %804 = vmatpush1.bf16.msra.mxu0 %v155
  %805 = vmatprep.subr.bf16.mxu0 %v160
  %806 = vmatpush1.bf16.msra.mxu0 %v159
  %807 = vmatprep.subr.bf16.mxu0 %v164
  %808 = vmatpush1.bf16.msra.mxu0 %v163
  %809 = vmatprep.subr.bf16.mxu0 %v168
  %810 = vmatpush1.bf16.msra.mxu0 %v167
  %811 = vmatprep.subr.bf16.mxu0 %v172
  %812 = vmatpush1.bf16.msra.mxu0 %v171
  %813 = vmatprep.subr.bf16.mxu0 %v176
  %814 = vmatpush1.bf16.msra.mxu0 %v175
  %815 = vmatprep.subr.bf16.mxu0 0
  %816 = vmatpush1.bf16.msra.mxu0 0
  %817 = vmatprep.subr.bf16.mxu0 0
  %818 = vmatpush1.bf16.msra.mxu0 0
  %819 = vmatprep.subr.bf16.mxu0 0
  %820 = vmatpush1.bf16.msra.mxu0 0
  %821 = vmatprep.subr.bf16.mxu0 0
  %822 = vmatpush1.bf16.msra.mxu0 0
  %823 = vmatprep.subr.bf16.mxu0 0
  %824 = vmatpush1.bf16.msra.mxu0 0
  %825 = vmatprep.subr.bf16.mxu0 0
  %826 = vmatpush1.bf16.msra.mxu0 0
  %827 = vmatprep.subr.bf16.mxu0 0
  %828 = vmatpush1.bf16.msra.mxu0 0
  %829 = vmatprep.subr.bf16.mxu0 0
  %830 = vmatpush1.bf16.msra.mxu0 0
  %831 = vmatprep.mubr.bf16.mxu0 0
  %832 = vmatmul.mubr.bf16.gmra.mrb[0].mxu0 %v798
  %v833 = vpop.f32.mrb[0].mxu0
  %v834 = vadd.f32 0.0, %v833
  %v835 = vpop.f32.mrb[0].mxu0
  %v836 = vadd.f32 0.0, %v835
  %v837 = vpop.f32.mrb[0].mxu0
  %v838 = vpop.f32.mrb[0].mxu0
  %839 = vdwg.mxu0
  %840 = vmatprep.subr.bf16.mxu0 %v150
  %841 = vmatpush1.bf16.msra.mxu0 %v149
  %842 = vmatprep.subr.bf16.mxu0 %v154
  %843 = vmatpush1.bf16.msra.mxu0 %v153
  %844 = vmatprep.subr.bf16.mxu0 %v158
  %845 = vmatpush1.bf16.msra.mxu0 %v157
  %846 = vmatprep.subr.bf16.mxu0 %v162
  %847 = vmatpush1.bf16.msra.mxu0 %v161
  %848 = vmatprep.subr.bf16.mxu0 %v166
  %849 = vmatpush1.bf16.msra.mxu0 %v165
  %850 = vmatprep.subr.bf16.mxu0 %v170
  %851 = vmatpush1.bf16.msra.mxu0 %v169
  %852 = vmatprep.subr.bf16.mxu0 %v174
  %853 = vmatpush1.bf16.msra.mxu0 %v173
  %854 = vmatprep.subr.bf16.mxu0 %v178
  %855 = vmatpush1.bf16.msra.mxu0 %v177
  %856 = vmatprep.subr.bf16.mxu0 0
  %857 = vmatpush1.bf16.msra.mxu0 0
  %858 = vmatprep.subr.bf16.mxu0 0
  %859 = vmatpush1.bf16.msra.mxu0 0
  %860 = vmatprep.subr.bf16.mxu0 0
  %861 = vmatpush1.bf16.msra.mxu0 0
  %862 = vmatprep.subr.bf16.mxu0 0
  %863 = vmatpush1.bf16.msra.mxu0 0
  %864 = vmatprep.subr.bf16.mxu0 0
  %865 = vmatpush1.bf16.msra.mxu0 0
  %866 = vmatprep.subr.bf16.mxu0 0
  %867 = vmatpush1.bf16.msra.mxu0 0
  %868 = vmatprep.subr.bf16.mxu0 0
  %869 = vmatpush1.bf16.msra.mxu0 0
  %870 = vmatprep.subr.bf16.mxu0 0
  %871 = vmatpush1.bf16.msra.mxu0 0
  %872 = vmatprep.mubr.bf16.mxu0 0
  %873 = vmatmul.mubr.bf16.gmra.mrb[0].mxu0 %v798
  %v874 = vpop.f32.mrb[0].mxu0
  %v875 = vadd.f32 0.0, %v874
  %v876 = vpop.f32.mrb[0].mxu0
  %v877 = vadd.f32 0.0, %v876
  %v878 = vpop.f32.mrb[0].mxu0
  %v879 = vpop.f32.mrb[0].mxu0
  %880 = vdwg.mxu0
  %v885 = vcombine.low %v834, %v836
  %v886 = vcombine.low %v875, %v877
  %v888 = vunpack.c.l.s4 1983009808
  %v889 = vunpack.c.0.s8 %v888
  %v890 = vlaneseq
  %v891 = vshrl.u32 %v890, 7
  %v892 = vsub.s32 %v889, %v891
  %v893 = vrot.slane %v885, %v892
  %v895 = vunpack.c.l.s4 1983009808
  %v896 = vunpack.c.0.s8 %v895
  %v897 = vlaneseq
  %v898 = vshrl.u32 %v897, 7
  %v899 = vsub.s32 %v896, %v898
  %v900 = vrot.slane %v886, %v899
  %v901 = vcombine.low %v893, %v900
  %v903 = vadd.f32 %v797, %v901
  %v904 = vxor.u32 %v903, 2147483648
  %v905 = vmul.f32 %v904, 1.442695
  %v906 = vpow.pop %v905
  %v907 = vadd.f32 %v906, 1.0
  %v908 = vrcp.pop %v907
  %v909 = vmul.f32 1.0, %v908
  %v911 = vrot.slane %v903, 2
  %v913 = vxor.u32 %v911, 2147483648
  %v914 = vmul.f32 %v913, 1.442695
  %v915 = vpow.pop %v914
  %v916 = vadd.f32 %v915, 1.0
  %v917 = vrcp.pop %v916
  %v918 = vmul.f32 1.0, %v917
  %v919 = vrot.slane %v903, 4
  %v921 = vtanh.pop %v919
  %v922 = vrot.slane %v903, 6
  %v924 = vxor.u32 %v922, 2147483648
  %v925 = vmul.f32 %v924, 1.442695
  %v926 = vpow.pop %v925
  %v927 = vadd.f32 %v926, 1.0
  %v928 = vrcp.pop %v927
  %v929 = vmul.f32 1.0, %v928
  %v930 = vmul.f32 %v918, %v795
  %v931 = vmul.f32 %v909, %v921
  %v932 = vadd.f32 %v930, %v931
  %v933 = vtanh.pop %v932
  %v934 = vmul.f32 %v929, %v933
  %vm935 = vcmp.gt.s32.totalorder %v17, 4
  %v936 = vsel %vm935, 1, 0
  %937 = vset.pattern.permute.xlu0 0
  %938 = vperm.xlu0 %937, %v936
  %v939 = vpop.permute.xlu0 %938
  %vm940 = vcmp.eq.s32.totalorder %v939, 1
  %v941 = vsel %vm940, %v934, %v794
  %v942 = vsel %vm940, %v932, %v795
  %s943 = scalar_lea.vmem %s0, 40
  %v944 = vld [vmem:[%s943] sm:$0xff]
  %v945 = vpack.c.bf16 %v941, %v941
  %946 = vmatprep.subr.bf16.mxu0 %v148
  %947 = vmatpush1.bf16.msra.mxu0 %v147
  %948 = vmatprep.subr.bf16.mxu0 %v152
  %949 = vmatpush1.bf16.msra.mxu0 %v151
  %950 = vmatprep.subr.bf16.mxu0 %v156
  %951 = vmatpush1.bf16.msra.mxu0 %v155
  %952 = vmatprep.subr.bf16.mxu0 %v160
  %953 = vmatpush1.bf16.msra.mxu0 %v159
  %954 = vmatprep.subr.bf16.mxu0 %v164
  %955 = vmatpush1.bf16.msra.mxu0 %v163
  %956 = vmatprep.subr.bf16.mxu0 %v168
  %957 = vmatpush1.bf16.msra.mxu0 %v167
  %958 = vmatprep.subr.bf16.mxu0 %v172
  %959 = vmatpush1.bf16.msra.mxu0 %v171
  %960 = vmatprep.subr.bf16.mxu0 %v176
  %961 = vmatpush1.bf16.msra.mxu0 %v175
  %962 = vmatprep.subr.bf16.mxu0 0
  %963 = vmatpush1.bf16.msra.mxu0 0
  %964 = vmatprep.subr.bf16.mxu0 0
  %965 = vmatpush1.bf16.msra.mxu0 0
  %966 = vmatprep.subr.bf16.mxu0 0
  %967 = vmatpush1.bf16.msra.mxu0 0
  %968 = vmatprep.subr.bf16.mxu0 0
  %969 = vmatpush1.bf16.msra.mxu0 0
  %970 = vmatprep.subr.bf16.mxu0 0
  %971 = vmatpush1.bf16.msra.mxu0 0
  %972 = vmatprep.subr.bf16.mxu0 0
  %973 = vmatpush1.bf16.msra.mxu0 0
  %974 = vmatprep.subr.bf16.mxu0 0
  %975 = vmatpush1.bf16.msra.mxu0 0
  %976 = vmatprep.subr.bf16.mxu0 0
  %977 = vmatpush1.bf16.msra.mxu0 0
  %978 = vmatprep.mubr.bf16.mxu0 0
  %979 = vmatmul.mubr.bf16.gmra.mrb[0].mxu0 %v945
  %v980 = vpop.f32.mrb[0].mxu0
  %v981 = vadd.f32 0.0, %v980
  %v982 = vpop.f32.mrb[0].mxu0
  %v983 = vadd.f32 0.0, %v982
  %v984 = vpop.f32.mrb[0].mxu0
  %v985 = vpop.f32.mrb[0].mxu0
  %986 = vdwg.mxu0
  %987 = vmatprep.subr.bf16.mxu0 %v150
  %988 = vmatpush1.bf16.msra.mxu0 %v149
  %989 = vmatprep.subr.bf16.mxu0 %v154
  %990 = vmatpush1.bf16.msra.mxu0 %v153
  %991 = vmatprep.subr.bf16.mxu0 %v158
  %992 = vmatpush1.bf16.msra.mxu0 %v157
  %993 = vmatprep.subr.bf16.mxu0 %v162
  %994 = vmatpush1.bf16.msra.mxu0 %v161
  %995 = vmatprep.subr.bf16.mxu0 %v166
  %996 = vmatpush1.bf16.msra.mxu0 %v165
  %997 = vmatprep.subr.bf16.mxu0 %v170
  %998 = vmatpush1.bf16.msra.mxu0 %v169
  %999 = vmatprep.subr.bf16.mxu0 %v174
  %1000 = vmatpush1.bf16.msra.mxu0 %v173
  %1001 = vmatprep.subr.bf16.mxu0 %v178
  %1002 = vmatpush1.bf16.msra.mxu0 %v177
  %1003 = vmatprep.subr.bf16.mxu0 0
  %1004 = vmatpush1.bf16.msra.mxu0 0
  %1005 = vmatprep.subr.bf16.mxu0 0
  %1006 = vmatpush1.bf16.msra.mxu0 0
  %1007 = vmatprep.subr.bf16.mxu0 0
  %1008 = vmatpush1.bf16.msra.mxu0 0
  %1009 = vmatprep.subr.bf16.mxu0 0
  %1010 = vmatpush1.bf16.msra.mxu0 0
  %1011 = vmatprep.subr.bf16.mxu0 0
  %1012 = vmatpush1.bf16.msra.mxu0 0
  %1013 = vmatprep.subr.bf16.mxu0 0
  %1014 = vmatpush1.bf16.msra.mxu0 0
  %1015 = vmatprep.subr.bf16.mxu0 0
  %1016 = vmatpush1.bf16.msra.mxu0 0
  %1017 = vmatprep.subr.bf16.mxu0 0
  %1018 = vmatpush1.bf16.msra.mxu0 0
  %1019 = vmatprep.mubr.bf16.mxu0 0
  %1020 = vmatmul.mubr.bf16.gmra.mrb[0].mxu0 %v945
  %v1021 = vpop.f32.mrb[0].mxu0
  %v1022 = vadd.f32 0.0, %v1021
  %v1023 = vpop.f32.mrb[0].mxu0
  %v1024 = vadd.f32 0.0, %v1023
  %v1025 = vpop.f32.mrb[0].mxu0
  %v1026 = vpop.f32.mrb[0].mxu0
  %1027 = vdwg.mxu0
  %v1032 = vcombine.low %v981, %v983
  %v1033 = vcombine.low %v1022, %v1024
  %v1035 = vunpack.c.l.s4 1983009808
  %v1036 = vunpack.c.0.s8 %v1035
  %v1037 = vlaneseq
  %v1038 = vshrl.u32 %v1037, 7
  %v1039 = vsub.s32 %v1036, %v1038
  %v1040 = vrot.slane %v1032, %v1039
  %v1042 = vunpack.c.l.s4 1983009808
  %v1043 = vunpack.c.0.s8 %v1042
  %v1044 = vlaneseq
  %v1045 = vshrl.u32 %v1044, 7
  %v1046 = vsub.s32 %v1043, %v1045
  %v1047 = vrot.slane %v1033, %v1046
  %v1048 = vcombine.low %v1040, %v1047
  %v1050 = vadd.f32 %v944, %v1048
  %v1051 = vxor.u32 %v1050, 2147483648
  %v1052 = vmul.f32 %v1051, 1.442695
  %v1053 = vpow.pop %v1052
  %v1054 = vadd.f32 %v1053, 1.0
  %v1055 = vrcp.pop %v1054
  %v1056 = vmul.f32 1.0, %v1055
  %v1058 = vrot.slane %v1050, 2
  %v1060 = vxor.u32 %v1058, 2147483648
  %v1061 = vmul.f32 %v1060, 1.442695
  %v1062 = vpow.pop %v1061
  %v1063 = vadd.f32 %v1062, 1.0
  %v1064 = vrcp.pop %v1063
  %v1065 = vmul.f32 1.0, %v1064
  %v1066 = vrot.slane %v1050, 4
  %v1068 = vtanh.pop %v1066
  %v1069 = vrot.slane %v1050, 6
  %v1071 = vxor.u32 %v1069, 2147483648
  %v1072 = vmul.f32 %v1071, 1.442695
  %v1073 = vpow.pop %v1072
  %v1074 = vadd.f32 %v1073, 1.0
  %v1075 = vrcp.pop %v1074
  %v1076 = vmul.f32 1.0, %v1075
  %v1077 = vmul.f32 %v1065, %v942
  %v1078 = vmul.f32 %v1056, %v1068
  %v1079 = vadd.f32 %v1077, %v1078
  %v1080 = vtanh.pop %v1079
  %v1081 = vmul.f32 %v1076, %v1080
  %vm1082 = vcmp.gt.s32.totalorder %v17, 5
  %v1083 = vsel %vm1082, 1, 0
  %1084 = vset.pattern.permute.xlu0 0
  %1085 = vperm.xlu0 %1084, %v1083
  %v1086 = vpop.permute.xlu0 %1085
  %vm1087 = vcmp.eq.s32.totalorder %v1086, 1
  %v1088 = vsel %vm1087, %v1081, %v941
  %v1089 = vsel %vm1087, %v1079, %v942
  %1090 = vst [vmem:[%s3] sm:$0x3] %v1088
  %1091 = vst [vmem:[%s4] sm:$0x3] %v1089
  // Predicated region
  $region14: #{forward.8} parent=0 // pred_check
    _
  $region15: #{forward.8} parent=0 // pred_check_branch
    %1093 = sbr.rel (0) target = $region17
  $region16: #{forward.8} parent=0 // pred_region
    _
  $region17: #{forward.8} parent=0 // pred_fallthru
    _
  // Predicated region
  $region18: #{forward.8} parent=0 // pred_check
    _
  $region19: #{forward.8} parent=0 // pred_check_branch
    %1095 = sbr.rel (0) target = $region21
  $region20: #{forward.8} parent=0 // pred_region
    _
  $region21: #{forward.8} parent=0 // pred_fallthru
    _
  // Predicated region
  $region22: #{forward.8} parent=0 // pred_check
    _
  $region23: #{forward.8} parent=0 // pred_check_branch
    %1097 = sbr.rel (0) target = $region25
  $region24: #{forward.8} parent=0 // pred_region
    _
  $region25: #{forward.8} parent=0 // pred_fallthru
    _
  // Predicated region
  $region26: #{forward.8} parent=0 // pred_check
    _
  $region27: #{forward.8} parent=0 // pred_check_branch
    %1099 = sbr.rel (0) target = $region29
  $region28: #{forward.8} parent=0 // pred_region
    _
  $region29: #{forward.8} parent=0 // pred_fallthru
    _

</llo_original>
